<compile_context>
chip_gen: v7x
topology: tpu7x:2x2x1
jax: 0.10.0
libtpu: 0.0.40
codegen_flags: <defaults>
</compile_context>

<pallas_src>
import functools

import jax
import jax.numpy as jnp
from jax.experimental import pallas as pl
from jax.experimental.pallas import tpu as pltpu

HIDDEN = 32            # hidden_size (small-shape variant of the module)
OUTPUT_SIZE = 1
LN_EPS = 1e-5
STREAMS = ('mainstream', 'positive', 'negative', 'index')
NUM_STREAMS = len(STREAMS)


def _round_up(n, m):
    return (n + m - 1) // m * m


# --------------------------------------------------------------------------
# Fused kernel: 4 x (2-layer LSTM) + attention + layernorm + fc1/relu/fc2.
# --------------------------------------------------------------------------
def _mi_lstm_kernel(x_ref, wrec_ref, consts_ref, hmat_ref, hvec_ref, out_ref,
                    *, seq_len, batch):
    S, H = NUM_STREAMS, HIDDEN
    T, B = seq_len, batch
    SB = S * B            # rows: stream-major, batch-minor
    SH = S * H            # wide lane extent
    HW = H // 2

    # ---- unpack packed operands (static slices; sublane offsets % 8 == 0) --
    w0h = wrec_ref[pl.ds(0, SH), :]                       # (S*H, 4H) layer-0 recurrent
    w1 = wrec_ref[pl.ds(SH, 2 * SH), :]                   # (2*S*H, 4H) layer-1 [W_ih; W_hh]
    w0x = wrec_ref[pl.ds(3 * SH, wrec_ref.shape[0] - 3 * SH), :]  # (K0, 4H) layer-0 input (+bias row)

    b1 = consts_ref[pl.ds(0, SB), :]                      # (SB, 4H) layer-1 bias per row
    mask = consts_ref[pl.ds(SB, SB), :]                   # (SB, S*H) wide-layout stream mask
    e_exp = consts_ref[pl.ds(2 * SB, S), :]               # (S, S*H) lane-block expander

    hm = hmat_ref[...]
    wa = hm[:, 0:S]                                       # (4H, S)  attention W^T
    wf1 = hm[0:H, S:S + HW]                               # (H, H//2)
    wf2 = hm[0:HW, S + HW:S + HW + 1]                     # (H//2, 1)

    hv = hvec_ref[...]
    ba = hv[:, 0:S]
    gamma = hv[:, S:S + H]
    beta = hv[:, S + H:S + 2 * H]
    bf1 = hv[:, S + 2 * H:S + 2 * H + HW]
    bf2 = hv[:, S + 2 * H + HW:S + 2 * H + HW + 1]

    # ---- hoisted layer-0 input projection (b0 folded via ones-lane) --------
    xw0 = jnp.dot(x_ref[...], w0x, preferred_element_type=jnp.float32)  # (T*SB, 4H)

    def gate_update(gates, c):
        sig = jax.nn.sigmoid(gates)                       # one (SB, 4H) vreg EUP op
        i = sig[:, 0:H]
        f = sig[:, H:2 * H]
        o = sig[:, 3 * H:4 * H]
        g = jnp.tanh(gates[:, 2 * H:3 * H])
        c_new = f * c + i * g
        h_new = o * jnp.tanh(c_new)
        return h_new, c_new

    def widen(h):
        # (SB, H) dense -> (SB, S*H) wide: row r = s*B+b keeps its stream's
        # values in lane block s*H:(s+1)*H, zeros elsewhere.
        return jnp.concatenate([h] * S, axis=1) * mask

    h0w = jnp.zeros((SB, SH), jnp.float32)
    h1w = jnp.zeros((SB, SH), jnp.float32)
    c0 = jnp.zeros((SB, H), jnp.float32)
    c1 = jnp.zeros((SB, H), jnp.float32)

    # T=8 is small: fully unrolled static loop.
    # TODO(synk): for much larger T switch to lax.fori_loop(..., unroll=True)
    # with (h0w, h1w, c0, c1) as carry to bound live ranges / code size.
    for t in range(T):
        gates0 = xw0[t * SB:(t + 1) * SB, :] + jnp.dot(
            h0w, w0h, preferred_element_type=jnp.float32)
        h0, c0 = gate_update(gates0, c0)
        h0w = widen(h0)

        hcat = jnp.concatenate([h0w, h1w], axis=1)        # (SB, 2*S*H)
        gates1 = jnp.dot(hcat, w1, preferred_element_type=jnp.float32) + b1
        h1, c1 = gate_update(gates1, c1)
        h1w = widen(h1)

    # ---- attention over the 4 streams ---------------------------------------
    # concat_s h1[s, b]: streams occupy disjoint lane blocks of h1w, so the
    # concatenation is a sum over the S row-groups.
    cat = jnp.sum(h1w.reshape(S, B, SH), axis=0)          # (B, 4H)
    scores = jnp.dot(cat, wa, preferred_element_type=jnp.float32) + ba
    m = jnp.max(scores, axis=1, keepdims=True)
    e = jnp.exp(scores - m)
    aw = e * pl.reciprocal(jnp.sum(e, axis=1, keepdims=True), approx=True)

    # attended[b] = sum_s aw[b, s] * h1[s, b]
    aw_exp = jnp.dot(aw, e_exp, preferred_element_type=jnp.float32)   # (B, 4H)
    weighted = cat * aw_exp
    attended = (weighted[:, 0:H] + weighted[:, H:2 * H]
                + weighted[:, 2 * H:3 * H] + weighted[:, 3 * H:4 * H])  # (B, H)

    # ---- LayerNorm(H) + fc1 / relu / (dropout=identity) / fc2 ---------------
    mu = jnp.mean(attended, axis=1, keepdims=True)
    var = jnp.mean((attended - mu) ** 2, axis=1, keepdims=True)
    y = (attended - mu) * jax.lax.rsqrt(var + LN_EPS)
    y = y * gamma + beta

    hid = jnp.maximum(
        jnp.dot(y, wf1, preferred_element_type=jnp.float32) + bf1, 0.0)
    # TODO(synk): dropout is identity (eval-mode); training needs a PRNG mask.
    out_ref[...] = jnp.dot(hid, wf2, preferred_element_type=jnp.float32) + bf2


# --------------------------------------------------------------------------
# Wrapper: pack everything into 5 dense buffers and launch one pallas_call.
# --------------------------------------------------------------------------
def _pack_operands(params, xs):
    B, T, _ = xs[0].shape
    H, S = HIDDEN, NUM_STREAMS
    SB, SH = S * B, S * H

    d_aug = [int(x.shape[-1]) + 1 for x in xs]     # +1 ones-lane carries b0
    offs = [0]
    for d in d_aug[:-1]:
        offs.append(offs[-1] + d)
    sum_d = offs[-1] + d_aug[-1]
    k0 = _round_up(sum_d, 8)

    # X_wide: (T*S*B, k0); row t*S*B + s*B + b holds stream s's features (plus
    # a trailing 1.0) in its lane block, zeros elsewhere.
    blocks = []
    for s, x in enumerate(xs):
        xt = jnp.transpose(x, (1, 0, 2)).astype(jnp.float32)          # (T, B, D_s)
        xt = jnp.concatenate([xt, jnp.ones((T, B, 1), jnp.float32)], axis=-1)
        xt = jnp.pad(xt, ((0, 0), (0, 0), (offs[s], k0 - offs[s] - d_aug[s])))
        blocks.append(xt)
    x_wide = jnp.stack(blocks, axis=1).reshape(T * SB, k0)

    # Recurrent weight stack: [W0h (S*H) | W1x;W1h (2*S*H) | W0x+b0 (k0)] x 4H.
    w0h_stack = jnp.concatenate([params[n][1] for n in STREAMS], axis=0)
    w1_stack = jnp.concatenate([params[n][3] for n in STREAMS]
                               + [params[n][4] for n in STREAMS], axis=0)
    w0x_stack = jnp.concatenate(
        [jnp.concatenate([params[n][0], params[n][2]], axis=0) for n in STREAMS],
        axis=0)
    w0x_stack = jnp.pad(w0x_stack, ((0, k0 - sum_d), (0, 0)))
    w_rec = jnp.concatenate([w0h_stack, w1_stack, w0x_stack], axis=0)

    # Per-row constants: layer-1 bias (wide rows), wide-layout mask, expander.
    b1_wide = jnp.repeat(
        jnp.concatenate([params[n][5] for n in STREAMS], axis=0), B, axis=0)
    lane_stream = jnp.arange(SH) // H
    mask = (jnp.arange(SB)[:, None] // B == lane_stream[None, :]).astype(jnp.float32)
    e_exp = (jnp.arange(S)[:, None] == lane_stream[None, :]).astype(jnp.float32)
    consts = jnp.concatenate([b1_wide, mask, e_exp], axis=0)

    # Head: matrices packed along lanes; all row-vectors packed into one row.
    wa, ba, gamma, beta, wf1, bf1, wf2, bf2 = params['head']
    head_mat = jnp.concatenate([
        wa,
        jnp.pad(wf1, ((0, 4 * H - wf1.shape[0]), (0, 0))),
        jnp.pad(wf2, ((0, 4 * H - wf2.shape[0]), (0, 0))),
    ], axis=1)                                             # (4H, S + H//2 + 1)
    head_vec = jnp.concatenate([ba, gamma, beta, bf1, bf2], axis=1)

    return x_wide, w_rec, consts, head_mat, head_vec


def mi_lstm_forward(params, x_ms, x_pos, x_neg, x_idx):
    xs = (x_ms, x_pos, x_neg, x_idx)
    B, T, _ = x_ms.shape
    x_wide, w_rec, consts, head_mat, head_vec = _pack_operands(params, xs)

    out = pl.pallas_call(
        functools.partial(_mi_lstm_kernel, seq_len=T, batch=B),
        out_shape=jax.ShapeDtypeStruct((B, OUTPUT_SIZE), jnp.float32),
        compiler_params=pltpu.CompilerParams(),   # grid-less, fully VMEM-resident
    )(x_wide, w_rec, consts, head_mat, head_vec)
    return jnp.squeeze(out)   # matches torch .squeeze()


# --------------------------------------------------------------------------
# Deterministic parameter init (PyTorch-style layout, pre-transposed).
# --------------------------------------------------------------------------
def _uniform(key, shape, k):
    return jax.random.uniform(key, shape, jnp.float32, minval=-k, maxval=k)


def init_params(key, input_sizes):
    H = HIDDEN
    k = 1.0 / jnp.sqrt(H)
    params = {}
    for name in STREAMS:
        D = input_sizes[name]
        key, *ks = jax.random.split(key, 7)
        params[name] = (
            _uniform(ks[0], (D, 4 * H), k),       # W_ih layer0 (transposed)
            _uniform(ks[1], (H, 4 * H), k),       # W_hh layer0
            _uniform(ks[2], (1, 4 * H), k),       # b_ih0 + b_hh0 combined
            _uniform(ks[3], (H, 4 * H), k),       # W_ih layer1
            _uniform(ks[4], (H, 4 * H), k),       # W_hh layer1
            _uniform(ks[5], (1, 4 * H), k),       # b_ih1 + b_hh1 combined
        )
    key, *ks = jax.random.split(key, 7)
    params['head'] = (
        _uniform(ks[0], (4 * H, NUM_STREAMS), 1.0 / jnp.sqrt(4 * H)),  # attn W^T
        _uniform(ks[1], (1, NUM_STREAMS), 1.0 / jnp.sqrt(4 * H)),      # attn bias
        jnp.ones((1, H), jnp.float32),                                 # LN gamma
        jnp.zeros((1, H), jnp.float32),                                # LN beta
        _uniform(ks[2], (H, H // 2), 1.0 / jnp.sqrt(H)),               # fc1 W^T
        _uniform(ks[3], (1, H // 2), 1.0 / jnp.sqrt(H)),               # fc1 b
        _uniform(ks[4], (H // 2, 1), 1.0 / jnp.sqrt(H // 2)),          # fc2 W^T
        _uniform(ks[5], (1, 1), 1.0 / jnp.sqrt(H // 2)),               # fc2 b
    )
    return params


# --------------------------------------------------------------------------
# Pure-JAX reference (same math, python loop over time) for verification.
# --------------------------------------------------------------------------
def _ref_lstm2(x, p):
    wih0, whh0, b0, wih1, whh1, b1 = p
    B, T, _ = x.shape
    H = HIDDEN
    h0 = c0 = h1 = c1 = jnp.zeros((B, H), jnp.float32)

    def cell(xin, h, c, wih, whh, b):
        g = xin @ wih + h @ whh + b
        i, f, gg, o = (jax.nn.sigmoid(g[:, :H]), jax.nn.sigmoid(g[:, H:2 * H]),
                       jnp.tanh(g[:, 2 * H:3 * H]), jax.nn.sigmoid(g[:, 3 * H:]))
        c = f * c + i * gg
        return o * jnp.tanh(c), c

    for t in range(T):
        h0, c0 = cell(x[:, t, :], h0, c0, wih0, whh0, b0)
        h1, c1 = cell(h0, h1, c1, wih1, whh1, b1)
    return h1


def _ref_forward(params, x_ms, x_pos, x_neg, x_idx):
    outs = [_ref_lstm2(x, params[n]) for x, n in
            zip((x_ms, x_pos, x_neg, x_idx), STREAMS)]
    wa, ba, gamma, beta, w1, b1, w2, b2 = params['head']
    cat = jnp.concatenate(outs, axis=1)
    scores = cat @ wa + ba
    aw = jax.nn.softmax(scores, axis=1)
    att = sum(aw[:, i:i + 1] * outs[i] for i in range(NUM_STREAMS))
    mu = att.mean(axis=1, keepdims=True)
    var = ((att - mu) ** 2).mean(axis=1, keepdims=True)
    y = (att - mu) / jnp.sqrt(var + LN_EPS) * gamma + beta
    h = jnp.maximum(y @ w1 + b1, 0.0)
    return jnp.squeeze(h @ w2 + b2)


if __name__ == "__main__":
    key = jax.random.PRNGKey(0)
    input_sizes = {'mainstream': 8, 'positive': 6, 'negative': 6, 'index': 4}
    B, T = 2, 8

    pkey, k1, k2, k3, k4 = jax.random.split(key, 5)
    params = init_params(pkey, input_sizes)

    x_ms = jax.random.normal(k1, (B, T, input_sizes['mainstream']), jnp.float32)
    x_pos = jax.random.normal(k2, (B, T, input_sizes['positive']), jnp.float32)
    x_neg = jax.random.normal(k3, (B, T, input_sizes['negative']), jnp.float32)
    x_idx = jax.random.normal(k4, (B, T, input_sizes['index']), jnp.float32)

    fwd = jax.jit(mi_lstm_forward)
    out = jax.block_until_ready(fwd(params, x_ms, x_pos, x_neg, x_idx))

    ref = _ref_forward(params, x_ms, x_pos, x_neg, x_idx)
    assert out.shape == ref.shape == (B,)
    assert jnp.allclose(out, ref, rtol=1e-3, atol=1e-3), (out, ref)

    print("KERNEL_OK")
</pallas_src>

<mosaic_0001>
module attributes {stable_mosaic.version = 11 : i64} {
  func.func @_mi_lstm_kernel(%arg0: memref<64x32xf32, #tpu.memory_space<vmem>>, %arg1: memref<416x128xf32, #tpu.memory_space<vmem>>, %arg2: memref<20x128xf32, #tpu.memory_space<vmem>>, %arg3: memref<128x21xf32, #tpu.memory_space<vmem>>, %arg4: memref<1x85xf32, #tpu.memory_space<vmem>>, %arg5: memref<2x1xf32, #tpu.memory_space<vmem>>) attributes {dimension_semantics = [], scalar_prefetch = 0 : i64, scratch_operands = 0 : i64, tpu.core_type = #tpu.core_type<tc>} {
    %c0 = arith.constant 0 : index
    %c0_0 = arith.constant 0 : index
    %0 = vector.load %arg1[%c0, %c0_0] : memref<416x128xf32, #tpu.memory_space<vmem>>, vector<128x128xf32>
    %c128 = arith.constant 128 : index
    %c0_1 = arith.constant 0 : index
    %1 = vector.load %arg1[%c128, %c0_1] : memref<416x128xf32, #tpu.memory_space<vmem>>, vector<256x128xf32>
    %c384 = arith.constant 384 : index
    %c0_2 = arith.constant 0 : index
    %2 = vector.load %arg1[%c384, %c0_2] : memref<416x128xf32, #tpu.memory_space<vmem>>, vector<32x128xf32>
    %c0_3 = arith.constant 0 : index
    %c0_4 = arith.constant 0 : index
    %3 = vector.load %arg2[%c0_3, %c0_4] : memref<20x128xf32, #tpu.memory_space<vmem>>, vector<8x128xf32>
    %c8 = arith.constant 8 : index
    %c0_5 = arith.constant 0 : index
    %4 = vector.load %arg2[%c8, %c0_5] : memref<20x128xf32, #tpu.memory_space<vmem>>, vector<8x128xf32>
    %c16 = arith.constant 16 : index
    %c0_6 = arith.constant 0 : index
    %5 = vector.load %arg2[%c16, %c0_6] : memref<20x128xf32, #tpu.memory_space<vmem>>, vector<4x128xf32>
    %c0_7 = arith.constant 0 : index
    %c0_8 = arith.constant 0 : index
    %6 = vector.load %arg3[%c0_7, %c0_8] : memref<128x21xf32, #tpu.memory_space<vmem>>, vector<128x21xf32>
    %7 = vector.extract_strided_slice %6 {offsets = [0, 0], sizes = [128, 4], strides = [1, 1]} : vector<128x21xf32> to vector<128x4xf32>
    %8 = vector.extract_strided_slice %6 {offsets = [0, 4], sizes = [32, 16], strides = [1, 1]} : vector<128x21xf32> to vector<32x16xf32>
    %9 = vector.extract_strided_slice %6 {offsets = [0, 20], sizes = [16, 1], strides = [1, 1]} : vector<128x21xf32> to vector<16x1xf32>
    %c0_9 = arith.constant 0 : index
    %c0_10 = arith.constant 0 : index
    %10 = vector.load %arg4[%c0_9, %c0_10] : memref<1x85xf32, #tpu.memory_space<vmem>>, vector<1x85xf32>
    %11 = vector.extract_strided_slice %10 {offsets = [0, 0], sizes = [1, 4], strides = [1, 1]} : vector<1x85xf32> to vector<1x4xf32>
    %12 = vector.extract_strided_slice %10 {offsets = [0, 4], sizes = [1, 32], strides = [1, 1]} : vector<1x85xf32> to vector<1x32xf32>
    %13 = vector.extract_strided_slice %10 {offsets = [0, 36], sizes = [1, 32], strides = [1, 1]} : vector<1x85xf32> to vector<1x32xf32>
    %14 = vector.extract_strided_slice %10 {offsets = [0, 68], sizes = [1, 16], strides = [1, 1]} : vector<1x85xf32> to vector<1x16xf32>
    %15 = vector.extract_strided_slice %10 {offsets = [0, 84], sizes = [1, 1], strides = [1, 1]} : vector<1x85xf32> to vector<1x1xf32>
    %c0_11 = arith.constant 0 : index
    %c0_12 = arith.constant 0 : index
    %16 = vector.load %arg0[%c0_11, %c0_12] : memref<64x32xf32, #tpu.memory_space<vmem>>, vector<64x32xf32>
    %cst = arith.constant dense<0.000000e+00> : vector<64x128xf32>
    %17 = tpu.matmul %16, %2, %cst {dimension_numbers = #tpu.dot_dimension_numbers<[1], [0], [0], [1], [0, 0, 1, 1], [], []>} : vector<64x32xf32>, vector<32x128xf32>, vector<64x128xf32> -> vector<64x128xf32>
    %cst_13 = arith.constant 0.000000e+00 : f32
    %18 = vector.broadcast %cst_13 : f32 to vector<8x128xf32>
    %cst_14 = arith.constant 0.000000e+00 : f32
    %19 = vector.broadcast %cst_14 : f32 to vector<8x128xf32>
    %cst_15 = arith.constant 0.000000e+00 : f32
    %20 = vector.broadcast %cst_15 : f32 to vector<8x32xf32>
    %cst_16 = arith.constant 0.000000e+00 : f32
    %21 = vector.broadcast %cst_16 : f32 to vector<8x32xf32>
    %22 = vector.extract_strided_slice %17 {offsets = [0, 0], sizes = [8, 128], strides = [1, 1]} : vector<64x128xf32> to vector<8x128xf32>
    %cst_17 = arith.constant dense<0.000000e+00> : vector<8x128xf32>
    %23 = tpu.matmul %18, %0, %cst_17 {dimension_numbers = #tpu.dot_dimension_numbers<[1], [0], [0], [1], [0, 0, 1, 1], [], []>} : vector<8x128xf32>, vector<128x128xf32>, vector<8x128xf32> -> vector<8x128xf32>
    %24 = arith.addf %22, %23 : vector<8x128xf32>
    %25 = arith.negf %24 : vector<8x128xf32>
    %26 = math.exp %25 : vector<8x128xf32>
    %cst_18 = arith.constant 1.000000e+00 : f32
    %27 = vector.broadcast %cst_18 : f32 to vector<8x128xf32>
    %28 = arith.addf %27, %26 : vector<8x128xf32>
    %29 = arith.divf %27, %28 : vector<8x128xf32>
    %30 = vector.extract_strided_slice %29 {offsets = [0, 0], sizes = [8, 32], strides = [1, 1]} : vector<8x128xf32> to vector<8x32xf32>
    %31 = vector.extract_strided_slice %29 {offsets = [0, 32], sizes = [8, 32], strides = [1, 1]} : vector<8x128xf32> to vector<8x32xf32>
    %32 = vector.extract_strided_slice %29 {offsets = [0, 96], sizes = [8, 32], strides = [1, 1]} : vector<8x128xf32> to vector<8x32xf32>
    %33 = vector.extract_strided_slice %24 {offsets = [0, 64], sizes = [8, 32], strides = [1, 1]} : vector<8x128xf32> to vector<8x32xf32>
    %34 = math.tanh %33 : vector<8x32xf32>
    %35 = arith.mulf %31, %20 : vector<8x32xf32>
    %36 = arith.mulf %30, %34 : vector<8x32xf32>
    %37 = arith.addf %35, %36 : vector<8x32xf32>
    %38 = math.tanh %37 : vector<8x32xf32>
    %39 = arith.mulf %32, %38 : vector<8x32xf32>
    %40 = tpu.concatenate %39, %39, %39, %39 in 1 : vector<8x32xf32>, vector<8x32xf32>, vector<8x32xf32>, vector<8x32xf32> -> vector<8x128xf32>
    %41 = arith.mulf %40, %4 : vector<8x128xf32>
    %42 = tpu.concatenate %41, %19 in 1 : vector<8x128xf32>, vector<8x128xf32> -> vector<8x256xf32>
    %cst_19 = arith.constant dense<0.000000e+00> : vector<8x128xf32>
    %43 = tpu.matmul %42, %1, %cst_19 {dimension_numbers = #tpu.dot_dimension_numbers<[1], [0], [0], [1], [0, 0, 1, 1], [], []>} : vector<8x256xf32>, vector<256x128xf32>, vector<8x128xf32> -> vector<8x128xf32>
    %44 = arith.addf %43, %3 : vector<8x128xf32>
    %45 = arith.negf %44 : vector<8x128xf32>
    %46 = math.exp %45 : vector<8x128xf32>
    %cst_20 = arith.constant 1.000000e+00 : f32
    %47 = vector.broadcast %cst_20 : f32 to vector<8x128xf32>
    %48 = arith.addf %47, %46 : vector<8x128xf32>
    %49 = arith.divf %47, %48 : vector<8x128xf32>
    %50 = vector.extract_strided_slice %49 {offsets = [0, 0], sizes = [8, 32], strides = [1, 1]} : vector<8x128xf32> to vector<8x32xf32>
    %51 = vector.extract_strided_slice %49 {offsets = [0, 32], sizes = [8, 32], strides = [1, 1]} : vector<8x128xf32> to vector<8x32xf32>
    %52 = vector.extract_strided_slice %49 {offsets = [0, 96], sizes = [8, 32], strides = [1, 1]} : vector<8x128xf32> to vector<8x32xf32>
    %53 = vector.extract_strided_slice %44 {offsets = [0, 64], sizes = [8, 32], strides = [1, 1]} : vector<8x128xf32> to vector<8x32xf32>
    %54 = math.tanh %53 : vector<8x32xf32>
    %55 = arith.mulf %51, %21 : vector<8x32xf32>
    %56 = arith.mulf %50, %54 : vector<8x32xf32>
    %57 = arith.addf %55, %56 : vector<8x32xf32>
    %58 = math.tanh %57 : vector<8x32xf32>
    %59 = arith.mulf %52, %58 : vector<8x32xf32>
    %60 = tpu.concatenate %59, %59, %59, %59 in 1 : vector<8x32xf32>, vector<8x32xf32>, vector<8x32xf32>, vector<8x32xf32> -> vector<8x128xf32>
    %61 = arith.mulf %60, %4 : vector<8x128xf32>
    %62 = vector.extract_strided_slice %17 {offsets = [8, 0], sizes = [8, 128], strides = [1, 1]} : vector<64x128xf32> to vector<8x128xf32>
    %cst_21 = arith.constant dense<0.000000e+00> : vector<8x128xf32>
    %63 = tpu.matmul %41, %0, %cst_21 {dimension_numbers = #tpu.dot_dimension_numbers<[1], [0], [0], [1], [0, 0, 1, 1], [], []>} : vector<8x128xf32>, vector<128x128xf32>, vector<8x128xf32> -> vector<8x128xf32>
    %64 = arith.addf %62, %63 : vector<8x128xf32>
    %65 = arith.negf %64 : vector<8x128xf32>
    %66 = math.exp %65 : vector<8x128xf32>
    %cst_22 = arith.constant 1.000000e+00 : f32
    %67 = vector.broadcast %cst_22 : f32 to vector<8x128xf32>
    %68 = arith.addf %67, %66 : vector<8x128xf32>
    %69 = arith.divf %67, %68 : vector<8x128xf32>
    %70 = vector.extract_strided_slice %69 {offsets = [0, 0], sizes = [8, 32], strides = [1, 1]} : vector<8x128xf32> to vector<8x32xf32>
    %71 = vector.extract_strided_slice %69 {offsets = [0, 32], sizes = [8, 32], strides = [1, 1]} : vector<8x128xf32> to vector<8x32xf32>
    %72 = vector.extract_strided_slice %69 {offsets = [0, 96], sizes = [8, 32], strides = [1, 1]} : vector<8x128xf32> to vector<8x32xf32>
    %73 = vector.extract_strided_slice %64 {offsets = [0, 64], sizes = [8, 32], strides = [1, 1]} : vector<8x128xf32> to vector<8x32xf32>
    %74 = math.tanh %73 : vector<8x32xf32>
    %75 = arith.mulf %71, %37 : vector<8x32xf32>
    %76 = arith.mulf %70, %74 : vector<8x32xf32>
    %77 = arith.addf %75, %76 : vector<8x32xf32>
    %78 = math.tanh %77 : vector<8x32xf32>
    %79 = arith.mulf %72, %78 : vector<8x32xf32>
    %80 = tpu.concatenate %79, %79, %79, %79 in 1 : vector<8x32xf32>, vector<8x32xf32>, vector<8x32xf32>, vector<8x32xf32> -> vector<8x128xf32>
    %81 = arith.mulf %80, %4 : vector<8x128xf32>
    %82 = tpu.concatenate %81, %61 in 1 : vector<8x128xf32>, vector<8x128xf32> -> vector<8x256xf32>
    %cst_23 = arith.constant dense<0.000000e+00> : vector<8x128xf32>
    %83 = tpu.matmul %82, %1, %cst_23 {dimension_numbers = #tpu.dot_dimension_numbers<[1], [0], [0], [1], [0, 0, 1, 1], [], []>} : vector<8x256xf32>, vector<256x128xf32>, vector<8x128xf32> -> vector<8x128xf32>
    %84 = arith.addf %83, %3 : vector<8x128xf32>
    %85 = arith.negf %84 : vector<8x128xf32>
    %86 = math.exp %85 : vector<8x128xf32>
    %cst_24 = arith.constant 1.000000e+00 : f32
    %87 = vector.broadcast %cst_24 : f32 to vector<8x128xf32>
    %88 = arith.addf %87, %86 : vector<8x128xf32>
    %89 = arith.divf %87, %88 : vector<8x128xf32>
    %90 = vector.extract_strided_slice %89 {offsets = [0, 0], sizes = [8, 32], strides = [1, 1]} : vector<8x128xf32> to vector<8x32xf32>
    %91 = vector.extract_strided_slice %89 {offsets = [0, 32], sizes = [8, 32], strides = [1, 1]} : vector<8x128xf32> to vector<8x32xf32>
    %92 = vector.extract_strided_slice %89 {offsets = [0, 96], sizes = [8, 32], strides = [1, 1]} : vector<8x128xf32> to vector<8x32xf32>
    %93 = vector.extract_strided_slice %84 {offsets = [0, 64], sizes = [8, 32], strides = [1, 1]} : vector<8x128xf32> to vector<8x32xf32>
    %94 = math.tanh %93 : vector<8x32xf32>
    %95 = arith.mulf %91, %57 : vector<8x32xf32>
    %96 = arith.mulf %90, %94 : vector<8x32xf32>
    %97 = arith.addf %95, %96 : vector<8x32xf32>
    %98 = math.tanh %97 : vector<8x32xf32>
    %99 = arith.mulf %92, %98 : vector<8x32xf32>
    %100 = tpu.concatenate %99, %99, %99, %99 in 1 : vector<8x32xf32>, vector<8x32xf32>, vector<8x32xf32>, vector<8x32xf32> -> vector<8x128xf32>
    %101 = arith.mulf %100, %4 : vector<8x128xf32>
    %102 = vector.extract_strided_slice %17 {offsets = [16, 0], sizes = [8, 128], strides = [1, 1]} : vector<64x128xf32> to vector<8x128xf32>
    %cst_25 = arith.constant dense<0.000000e+00> : vector<8x128xf32>
    %103 = tpu.matmul %81, %0, %cst_25 {dimension_numbers = #tpu.dot_dimension_numbers<[1], [0], [0], [1], [0, 0, 1, 1], [], []>} : vector<8x128xf32>, vector<128x128xf32>, vector<8x128xf32> -> vector<8x128xf32>
    %104 = arith.addf %102, %103 : vector<8x128xf32>
    %105 = arith.negf %104 : vector<8x128xf32>
    %106 = math.exp %105 : vector<8x128xf32>
    %cst_26 = arith.constant 1.000000e+00 : f32
    %107 = vector.broadcast %cst_26 : f32 to vector<8x128xf32>
    %108 = arith.addf %107, %106 : vector<8x128xf32>
    %109 = arith.divf %107, %108 : vector<8x128xf32>
    %110 = vector.extract_strided_slice %109 {offsets = [0, 0], sizes = [8, 32], strides = [1, 1]} : vector<8x128xf32> to vector<8x32xf32>
    %111 = vector.extract_strided_slice %109 {offsets = [0, 32], sizes = [8, 32], strides = [1, 1]} : vector<8x128xf32> to vector<8x32xf32>
    %112 = vector.extract_strided_slice %109 {offsets = [0, 96], sizes = [8, 32], strides = [1, 1]} : vector<8x128xf32> to vector<8x32xf32>
    %113 = vector.extract_strided_slice %104 {offsets = [0, 64], sizes = [8, 32], strides = [1, 1]} : vector<8x128xf32> to vector<8x32xf32>
    %114 = math.tanh %113 : vector<8x32xf32>
    %115 = arith.mulf %111, %77 : vector<8x32xf32>
    %116 = arith.mulf %110, %114 : vector<8x32xf32>
    %117 = arith.addf %115, %116 : vector<8x32xf32>
    %118 = math.tanh %117 : vector<8x32xf32>
    %119 = arith.mulf %112, %118 : vector<8x32xf32>
    %120 = tpu.concatenate %119, %119, %119, %119 in 1 : vector<8x32xf32>, vector<8x32xf32>, vector<8x32xf32>, vector<8x32xf32> -> vector<8x128xf32>
    %121 = arith.mulf %120, %4 : vector<8x128xf32>
    %122 = tpu.concatenate %121, %101 in 1 : vector<8x128xf32>, vector<8x128xf32> -> vector<8x256xf32>
    %cst_27 = arith.constant dense<0.000000e+00> : vector<8x128xf32>
    %123 = tpu.matmul %122, %1, %cst_27 {dimension_numbers = #tpu.dot_dimension_numbers<[1], [0], [0], [1], [0, 0, 1, 1], [], []>} : vector<8x256xf32>, vector<256x128xf32>, vector<8x128xf32> -> vector<8x128xf32>
    %124 = arith.addf %123, %3 : vector<8x128xf32>
    %125 = arith.negf %124 : vector<8x128xf32>
    %126 = math.exp %125 : vector<8x128xf32>
    %cst_28 = arith.constant 1.000000e+00 : f32
    %127 = vector.broadcast %cst_28 : f32 to vector<8x128xf32>
    %128 = arith.addf %127, %126 : vector<8x128xf32>
    %129 = arith.divf %127, %128 : vector<8x128xf32>
    %130 = vector.extract_strided_slice %129 {offsets = [0, 0], sizes = [8, 32], strides = [1, 1]} : vector<8x128xf32> to vector<8x32xf32>
    %131 = vector.extract_strided_slice %129 {offsets = [0, 32], sizes = [8, 32], strides = [1, 1]} : vector<8x128xf32> to vector<8x32xf32>
    %132 = vector.extract_strided_slice %129 {offsets = [0, 96], sizes = [8, 32], strides = [1, 1]} : vector<8x128xf32> to vector<8x32xf32>
    %133 = vector.extract_strided_slice %124 {offsets = [0, 64], sizes = [8, 32], strides = [1, 1]} : vector<8x128xf32> to vector<8x32xf32>
    %134 = math.tanh %133 : vector<8x32xf32>
    %135 = arith.mulf %131, %97 : vector<8x32xf32>
    %136 = arith.mulf %130, %134 : vector<8x32xf32>
    %137 = arith.addf %135, %136 : vector<8x32xf32>
    %138 = math.tanh %137 : vector<8x32xf32>
    %139 = arith.mulf %132, %138 : vector<8x32xf32>
    %140 = tpu.concatenate %139, %139, %139, %139 in 1 : vector<8x32xf32>, vector<8x32xf32>, vector<8x32xf32>, vector<8x32xf32> -> vector<8x128xf32>
    %141 = arith.mulf %140, %4 : vector<8x128xf32>
    %142 = vector.extract_strided_slice %17 {offsets = [24, 0], sizes = [8, 128], strides = [1, 1]} : vector<64x128xf32> to vector<8x128xf32>
    %cst_29 = arith.constant dense<0.000000e+00> : vector<8x128xf32>
    %143 = tpu.matmul %121, %0, %cst_29 {dimension_numbers = #tpu.dot_dimension_numbers<[1], [0], [0], [1], [0, 0, 1, 1], [], []>} : vector<8x128xf32>, vector<128x128xf32>, vector<8x128xf32> -> vector<8x128xf32>
    %144 = arith.addf %142, %143 : vector<8x128xf32>
    %145 = arith.negf %144 : vector<8x128xf32>
    %146 = math.exp %145 : vector<8x128xf32>
    %cst_30 = arith.constant 1.000000e+00 : f32
    %147 = vector.broadcast %cst_30 : f32 to vector<8x128xf32>
    %148 = arith.addf %147, %146 : vector<8x128xf32>
    %149 = arith.divf %147, %148 : vector<8x128xf32>
    %150 = vector.extract_strided_slice %149 {offsets = [0, 0], sizes = [8, 32], strides = [1, 1]} : vector<8x128xf32> to vector<8x32xf32>
    %151 = vector.extract_strided_slice %149 {offsets = [0, 32], sizes = [8, 32], strides = [1, 1]} : vector<8x128xf32> to vector<8x32xf32>
    %152 = vector.extract_strided_slice %149 {offsets = [0, 96], sizes = [8, 32], strides = [1, 1]} : vector<8x128xf32> to vector<8x32xf32>
    %153 = vector.extract_strided_slice %144 {offsets = [0, 64], sizes = [8, 32], strides = [1, 1]} : vector<8x128xf32> to vector<8x32xf32>
    %154 = math.tanh %153 : vector<8x32xf32>
    %155 = arith.mulf %151, %117 : vector<8x32xf32>
    %156 = arith.mulf %150, %154 : vector<8x32xf32>
    %157 = arith.addf %155, %156 : vector<8x32xf32>
    %158 = math.tanh %157 : vector<8x32xf32>
    %159 = arith.mulf %152, %158 : vector<8x32xf32>
    %160 = tpu.concatenate %159, %159, %159, %159 in 1 : vector<8x32xf32>, vector<8x32xf32>, vector<8x32xf32>, vector<8x32xf32> -> vector<8x128xf32>
    %161 = arith.mulf %160, %4 : vector<8x128xf32>
    %162 = tpu.concatenate %161, %141 in 1 : vector<8x128xf32>, vector<8x128xf32> -> vector<8x256xf32>
    %cst_31 = arith.constant dense<0.000000e+00> : vector<8x128xf32>
    %163 = tpu.matmul %162, %1, %cst_31 {dimension_numbers = #tpu.dot_dimension_numbers<[1], [0], [0], [1], [0, 0, 1, 1], [], []>} : vector<8x256xf32>, vector<256x128xf32>, vector<8x128xf32> -> vector<8x128xf32>
    %164 = arith.addf %163, %3 : vector<8x128xf32>
    %165 = arith.negf %164 : vector<8x128xf32>
    %166 = math.exp %165 : vector<8x128xf32>
    %cst_32 = arith.constant 1.000000e+00 : f32
    %167 = vector.broadcast %cst_32 : f32 to vector<8x128xf32>
    %168 = arith.addf %167, %166 : vector<8x128xf32>
    %169 = arith.divf %167, %168 : vector<8x128xf32>
    %170 = vector.extract_strided_slice %169 {offsets = [0, 0], sizes = [8, 32], strides = [1, 1]} : vector<8x128xf32> to vector<8x32xf32>
    %171 = vector.extract_strided_slice %169 {offsets = [0, 32], sizes = [8, 32], strides = [1, 1]} : vector<8x128xf32> to vector<8x32xf32>
    %172 = vector.extract_strided_slice %169 {offsets = [0, 96], sizes = [8, 32], strides = [1, 1]} : vector<8x128xf32> to vector<8x32xf32>
    %173 = vector.extract_strided_slice %164 {offsets = [0, 64], sizes = [8, 32], strides = [1, 1]} : vector<8x128xf32> to vector<8x32xf32>
    %174 = math.tanh %173 : vector<8x32xf32>
    %175 = arith.mulf %171, %137 : vector<8x32xf32>
    %176 = arith.mulf %170, %174 : vector<8x32xf32>
    %177 = arith.addf %175, %176 : vector<8x32xf32>
    %178 = math.tanh %177 : vector<8x32xf32>
    %179 = arith.mulf %172, %178 : vector<8x32xf32>
    %180 = tpu.concatenate %179, %179, %179, %179 in 1 : vector<8x32xf32>, vector<8x32xf32>, vector<8x32xf32>, vector<8x32xf32> -> vector<8x128xf32>
    %181 = arith.mulf %180, %4 : vector<8x128xf32>
    %182 = vector.extract_strided_slice %17 {offsets = [32, 0], sizes = [8, 128], strides = [1, 1]} : vector<64x128xf32> to vector<8x128xf32>
    %cst_33 = arith.constant dense<0.000000e+00> : vector<8x128xf32>
    %183 = tpu.matmul %161, %0, %cst_33 {dimension_numbers = #tpu.dot_dimension_numbers<[1], [0], [0], [1], [0, 0, 1, 1], [], []>} : vector<8x128xf32>, vector<128x128xf32>, vector<8x128xf32> -> vector<8x128xf32>
    %184 = arith.addf %182, %183 : vector<8x128xf32>
    %185 = arith.negf %184 : vector<8x128xf32>
    %186 = math.exp %185 : vector<8x128xf32>
    %cst_34 = arith.constant 1.000000e+00 : f32
    %187 = vector.broadcast %cst_34 : f32 to vector<8x128xf32>
    %188 = arith.addf %187, %186 : vector<8x128xf32>
    %189 = arith.divf %187, %188 : vector<8x128xf32>
    %190 = vector.extract_strided_slice %189 {offsets = [0, 0], sizes = [8, 32], strides = [1, 1]} : vector<8x128xf32> to vector<8x32xf32>
    %191 = vector.extract_strided_slice %189 {offsets = [0, 32], sizes = [8, 32], strides = [1, 1]} : vector<8x128xf32> to vector<8x32xf32>
    %192 = vector.extract_strided_slice %189 {offsets = [0, 96], sizes = [8, 32], strides = [1, 1]} : vector<8x128xf32> to vector<8x32xf32>
    %193 = vector.extract_strided_slice %184 {offsets = [0, 64], sizes = [8, 32], strides = [1, 1]} : vector<8x128xf32> to vector<8x32xf32>
    %194 = math.tanh %193 : vector<8x32xf32>
    %195 = arith.mulf %191, %157 : vector<8x32xf32>
    %196 = arith.mulf %190, %194 : vector<8x32xf32>
    %197 = arith.addf %195, %196 : vector<8x32xf32>
    %198 = math.tanh %197 : vector<8x32xf32>
    %199 = arith.mulf %192, %198 : vector<8x32xf32>
    %200 = tpu.concatenate %199, %199, %199, %199 in 1 : vector<8x32xf32>, vector<8x32xf32>, vector<8x32xf32>, vector<8x32xf32> -> vector<8x128xf32>
    %201 = arith.mulf %200, %4 : vector<8x128xf32>
    %202 = tpu.concatenate %201, %181 in 1 : vector<8x128xf32>, vector<8x128xf32> -> vector<8x256xf32>
    %cst_35 = arith.constant dense<0.000000e+00> : vector<8x128xf32>
    %203 = tpu.matmul %202, %1, %cst_35 {dimension_numbers = #tpu.dot_dimension_numbers<[1], [0], [0], [1], [0, 0, 1, 1], [], []>} : vector<8x256xf32>, vector<256x128xf32>, vector<8x128xf32> -> vector<8x128xf32>
    %204 = arith.addf %203, %3 : vector<8x128xf32>
    %205 = arith.negf %204 : vector<8x128xf32>
    %206 = math.exp %205 : vector<8x128xf32>
    %cst_36 = arith.constant 1.000000e+00 : f32
    %207 = vector.broadcast %cst_36 : f32 to vector<8x128xf32>
    %208 = arith.addf %207, %206 : vector<8x128xf32>
    %209 = arith.divf %207, %208 : vector<8x128xf32>
    %210 = vector.extract_strided_slice %209 {offsets = [0, 0], sizes = [8, 32], strides = [1, 1]} : vector<8x128xf32> to vector<8x32xf32>
    %211 = vector.extract_strided_slice %209 {offsets = [0, 32], sizes = [8, 32], strides = [1, 1]} : vector<8x128xf32> to vector<8x32xf32>
    %212 = vector.extract_strided_slice %209 {offsets = [0, 96], sizes = [8, 32], strides = [1, 1]} : vector<8x128xf32> to vector<8x32xf32>
    %213 = vector.extract_strided_slice %204 {offsets = [0, 64], sizes = [8, 32], strides = [1, 1]} : vector<8x128xf32> to vector<8x32xf32>
    %214 = math.tanh %213 : vector<8x32xf32>
    %215 = arith.mulf %211, %177 : vector<8x32xf32>
    %216 = arith.mulf %210, %214 : vector<8x32xf32>
    %217 = arith.addf %215, %216 : vector<8x32xf32>
    %218 = math.tanh %217 : vector<8x32xf32>
    %219 = arith.mulf %212, %218 : vector<8x32xf32>
    %220 = tpu.concatenate %219, %219, %219, %219 in 1 : vector<8x32xf32>, vector<8x32xf32>, vector<8x32xf32>, vector<8x32xf32> -> vector<8x128xf32>
    %221 = arith.mulf %220, %4 : vector<8x128xf32>
    %222 = vector.extract_strided_slice %17 {offsets = [40, 0], sizes = [8, 128], strides = [1, 1]} : vector<64x128xf32> to vector<8x128xf32>
    %cst_37 = arith.constant dense<0.000000e+00> : vector<8x128xf32>
    %223 = tpu.matmul %201, %0, %cst_37 {dimension_numbers = #tpu.dot_dimension_numbers<[1], [0], [0], [1], [0, 0, 1, 1], [], []>} : vector<8x128xf32>, vector<128x128xf32>, vector<8x128xf32> -> vector<8x128xf32>
    %224 = arith.addf %222, %223 : vector<8x128xf32>
    %225 = arith.negf %224 : vector<8x128xf32>
    %226 = math.exp %225 : vector<8x128xf32>
    %cst_38 = arith.constant 1.000000e+00 : f32
    %227 = vector.broadcast %cst_38 : f32 to vector<8x128xf32>
    %228 = arith.addf %227, %226 : vector<8x128xf32>
    %229 = arith.divf %227, %228 : vector<8x128xf32>
    %230 = vector.extract_strided_slice %229 {offsets = [0, 0], sizes = [8, 32], strides = [1, 1]} : vector<8x128xf32> to vector<8x32xf32>
    %231 = vector.extract_strided_slice %229 {offsets = [0, 32], sizes = [8, 32], strides = [1, 1]} : vector<8x128xf32> to vector<8x32xf32>
    %232 = vector.extract_strided_slice %229 {offsets = [0, 96], sizes = [8, 32], strides = [1, 1]} : vector<8x128xf32> to vector<8x32xf32>
    %233 = vector.extract_strided_slice %224 {offsets = [0, 64], sizes = [8, 32], strides = [1, 1]} : vector<8x128xf32> to vector<8x32xf32>
    %234 = math.tanh %233 : vector<8x32xf32>
    %235 = arith.mulf %231, %197 : vector<8x32xf32>
    %236 = arith.mulf %230, %234 : vector<8x32xf32>
    %237 = arith.addf %235, %236 : vector<8x32xf32>
    %238 = math.tanh %237 : vector<8x32xf32>
    %239 = arith.mulf %232, %238 : vector<8x32xf32>
    %240 = tpu.concatenate %239, %239, %239, %239 in 1 : vector<8x32xf32>, vector<8x32xf32>, vector<8x32xf32>, vector<8x32xf32> -> vector<8x128xf32>
    %241 = arith.mulf %240, %4 : vector<8x128xf32>
    %242 = tpu.concatenate %241, %221 in 1 : vector<8x128xf32>, vector<8x128xf32> -> vector<8x256xf32>
    %cst_39 = arith.constant dense<0.000000e+00> : vector<8x128xf32>
    %243 = tpu.matmul %242, %1, %cst_39 {dimension_numbers = #tpu.dot_dimension_numbers<[1], [0], [0], [1], [0, 0, 1, 1], [], []>} : vector<8x256xf32>, vector<256x128xf32>, vector<8x128xf32> -> vector<8x128xf32>
    %244 = arith.addf %243, %3 : vector<8x128xf32>
    %245 = arith.negf %244 : vector<8x128xf32>
    %246 = math.exp %245 : vector<8x128xf32>
    %cst_40 = arith.constant 1.000000e+00 : f32
    %247 = vector.broadcast %cst_40 : f32 to vector<8x128xf32>
    %248 = arith.addf %247, %246 : vector<8x128xf32>
    %249 = arith.divf %247, %248 : vector<8x128xf32>
    %250 = vector.extract_strided_slice %249 {offsets = [0, 0], sizes = [8, 32], strides = [1, 1]} : vector<8x128xf32> to vector<8x32xf32>
    %251 = vector.extract_strided_slice %249 {offsets = [0, 32], sizes = [8, 32], strides = [1, 1]} : vector<8x128xf32> to vector<8x32xf32>
    %252 = vector.extract_strided_slice %249 {offsets = [0, 96], sizes = [8, 32], strides = [1, 1]} : vector<8x128xf32> to vector<8x32xf32>
    %253 = vector.extract_strided_slice %244 {offsets = [0, 64], sizes = [8, 32], strides = [1, 1]} : vector<8x128xf32> to vector<8x32xf32>
    %254 = math.tanh %253 : vector<8x32xf32>
    %255 = arith.mulf %251, %217 : vector<8x32xf32>
    %256 = arith.mulf %250, %254 : vector<8x32xf32>
    %257 = arith.addf %255, %256 : vector<8x32xf32>
    %258 = math.tanh %257 : vector<8x32xf32>
    %259 = arith.mulf %252, %258 : vector<8x32xf32>
    %260 = tpu.concatenate %259, %259, %259, %259 in 1 : vector<8x32xf32>, vector<8x32xf32>, vector<8x32xf32>, vector<8x32xf32> -> vector<8x128xf32>
    %261 = arith.mulf %260, %4 : vector<8x128xf32>
    %262 = vector.extract_strided_slice %17 {offsets = [48, 0], sizes = [8, 128], strides = [1, 1]} : vector<64x128xf32> to vector<8x128xf32>
    %cst_41 = arith.constant dense<0.000000e+00> : vector<8x128xf32>
    %263 = tpu.matmul %241, %0, %cst_41 {dimension_numbers = #tpu.dot_dimension_numbers<[1], [0], [0], [1], [0, 0, 1, 1], [], []>} : vector<8x128xf32>, vector<128x128xf32>, vector<8x128xf32> -> vector<8x128xf32>
    %264 = arith.addf %262, %263 : vector<8x128xf32>
    %265 = arith.negf %264 : vector<8x128xf32>
    %266 = math.exp %265 : vector<8x128xf32>
    %cst_42 = arith.constant 1.000000e+00 : f32
    %267 = vector.broadcast %cst_42 : f32 to vector<8x128xf32>
    %268 = arith.addf %267, %266 : vector<8x128xf32>
    %269 = arith.divf %267, %268 : vector<8x128xf32>
    %270 = vector.extract_strided_slice %269 {offsets = [0, 0], sizes = [8, 32], strides = [1, 1]} : vector<8x128xf32> to vector<8x32xf32>
    %271 = vector.extract_strided_slice %269 {offsets = [0, 32], sizes = [8, 32], strides = [1, 1]} : vector<8x128xf32> to vector<8x32xf32>
    %272 = vector.extract_strided_slice %269 {offsets = [0, 96], sizes = [8, 32], strides = [1, 1]} : vector<8x128xf32> to vector<8x32xf32>
    %273 = vector.extract_strided_slice %264 {offsets = [0, 64], sizes = [8, 32], strides = [1, 1]} : vector<8x128xf32> to vector<8x32xf32>
    %274 = math.tanh %273 : vector<8x32xf32>
    %275 = arith.mulf %271, %237 : vector<8x32xf32>
    %276 = arith.mulf %270, %274 : vector<8x32xf32>
    %277 = arith.addf %275, %276 : vector<8x32xf32>
    %278 = math.tanh %277 : vector<8x32xf32>
    %279 = arith.mulf %272, %278 : vector<8x32xf32>
    %280 = tpu.concatenate %279, %279, %279, %279 in 1 : vector<8x32xf32>, vector<8x32xf32>, vector<8x32xf32>, vector<8x32xf32> -> vector<8x128xf32>
    %281 = arith.mulf %280, %4 : vector<8x128xf32>
    %282 = tpu.concatenate %281, %261 in 1 : vector<8x128xf32>, vector<8x128xf32> -> vector<8x256xf32>
    %cst_43 = arith.constant dense<0.000000e+00> : vector<8x128xf32>
    %283 = tpu.matmul %282, %1, %cst_43 {dimension_numbers = #tpu.dot_dimension_numbers<[1], [0], [0], [1], [0, 0, 1, 1], [], []>} : vector<8x256xf32>, vector<256x128xf32>, vector<8x128xf32> -> vector<8x128xf32>
    %284 = arith.addf %283, %3 : vector<8x128xf32>
    %285 = arith.negf %284 : vector<8x128xf32>
    %286 = math.exp %285 : vector<8x128xf32>
    %cst_44 = arith.constant 1.000000e+00 : f32
    %287 = vector.broadcast %cst_44 : f32 to vector<8x128xf32>
    %288 = arith.addf %287, %286 : vector<8x128xf32>
    %289 = arith.divf %287, %288 : vector<8x128xf32>
    %290 = vector.extract_strided_slice %289 {offsets = [0, 0], sizes = [8, 32], strides = [1, 1]} : vector<8x128xf32> to vector<8x32xf32>
    %291 = vector.extract_strided_slice %289 {offsets = [0, 32], sizes = [8, 32], strides = [1, 1]} : vector<8x128xf32> to vector<8x32xf32>
    %292 = vector.extract_strided_slice %289 {offsets = [0, 96], sizes = [8, 32], strides = [1, 1]} : vector<8x128xf32> to vector<8x32xf32>
    %293 = vector.extract_strided_slice %284 {offsets = [0, 64], sizes = [8, 32], strides = [1, 1]} : vector<8x128xf32> to vector<8x32xf32>
    %294 = math.tanh %293 : vector<8x32xf32>
    %295 = arith.mulf %291, %257 : vector<8x32xf32>
    %296 = arith.mulf %290, %294 : vector<8x32xf32>
    %297 = arith.addf %295, %296 : vector<8x32xf32>
    %298 = math.tanh %297 : vector<8x32xf32>
    %299 = arith.mulf %292, %298 : vector<8x32xf32>
    %300 = tpu.concatenate %299, %299, %299, %299 in 1 : vector<8x32xf32>, vector<8x32xf32>, vector<8x32xf32>, vector<8x32xf32> -> vector<8x128xf32>
    %301 = arith.mulf %300, %4 : vector<8x128xf32>
    %302 = vector.extract_strided_slice %17 {offsets = [56, 0], sizes = [8, 128], strides = [1, 1]} : vector<64x128xf32> to vector<8x128xf32>
    %cst_45 = arith.constant dense<0.000000e+00> : vector<8x128xf32>
    %303 = tpu.matmul %281, %0, %cst_45 {dimension_numbers = #tpu.dot_dimension_numbers<[1], [0], [0], [1], [0, 0, 1, 1], [], []>} : vector<8x128xf32>, vector<128x128xf32>, vector<8x128xf32> -> vector<8x128xf32>
    %304 = arith.addf %302, %303 : vector<8x128xf32>
    %305 = arith.negf %304 : vector<8x128xf32>
    %306 = math.exp %305 : vector<8x128xf32>
    %cst_46 = arith.constant 1.000000e+00 : f32
    %307 = vector.broadcast %cst_46 : f32 to vector<8x128xf32>
    %308 = arith.addf %307, %306 : vector<8x128xf32>
    %309 = arith.divf %307, %308 : vector<8x128xf32>
    %310 = vector.extract_strided_slice %309 {offsets = [0, 0], sizes = [8, 32], strides = [1, 1]} : vector<8x128xf32> to vector<8x32xf32>
    %311 = vector.extract_strided_slice %309 {offsets = [0, 32], sizes = [8, 32], strides = [1, 1]} : vector<8x128xf32> to vector<8x32xf32>
    %312 = vector.extract_strided_slice %309 {offsets = [0, 96], sizes = [8, 32], strides = [1, 1]} : vector<8x128xf32> to vector<8x32xf32>
    %313 = vector.extract_strided_slice %304 {offsets = [0, 64], sizes = [8, 32], strides = [1, 1]} : vector<8x128xf32> to vector<8x32xf32>
    %314 = math.tanh %313 : vector<8x32xf32>
    %315 = arith.mulf %311, %277 : vector<8x32xf32>
    %316 = arith.mulf %310, %314 : vector<8x32xf32>
    %317 = arith.addf %315, %316 : vector<8x32xf32>
    %318 = math.tanh %317 : vector<8x32xf32>
    %319 = arith.mulf %312, %318 : vector<8x32xf32>
    %320 = tpu.concatenate %319, %319, %319, %319 in 1 : vector<8x32xf32>, vector<8x32xf32>, vector<8x32xf32>, vector<8x32xf32> -> vector<8x128xf32>
    %321 = arith.mulf %320, %4 : vector<8x128xf32>
    %322 = tpu.concatenate %321, %301 in 1 : vector<8x128xf32>, vector<8x128xf32> -> vector<8x256xf32>
    %cst_47 = arith.constant dense<0.000000e+00> : vector<8x128xf32>
    %323 = tpu.matmul %322, %1, %cst_47 {dimension_numbers = #tpu.dot_dimension_numbers<[1], [0], [0], [1], [0, 0, 1, 1], [], []>} : vector<8x256xf32>, vector<256x128xf32>, vector<8x128xf32> -> vector<8x128xf32>
    %324 = arith.addf %323, %3 : vector<8x128xf32>
    %325 = arith.negf %324 : vector<8x128xf32>
    %326 = math.exp %325 : vector<8x128xf32>
    %cst_48 = arith.constant 1.000000e+00 : f32
    %327 = vector.broadcast %cst_48 : f32 to vector<8x128xf32>
    %328 = arith.addf %327, %326 : vector<8x128xf32>
    %329 = arith.divf %327, %328 : vector<8x128xf32>
    %330 = vector.extract_strided_slice %329 {offsets = [0, 0], sizes = [8, 32], strides = [1, 1]} : vector<8x128xf32> to vector<8x32xf32>
    %331 = vector.extract_strided_slice %329 {offsets = [0, 32], sizes = [8, 32], strides = [1, 1]} : vector<8x128xf32> to vector<8x32xf32>
    %332 = vector.extract_strided_slice %329 {offsets = [0, 96], sizes = [8, 32], strides = [1, 1]} : vector<8x128xf32> to vector<8x32xf32>
    %333 = vector.extract_strided_slice %324 {offsets = [0, 64], sizes = [8, 32], strides = [1, 1]} : vector<8x128xf32> to vector<8x32xf32>
    %334 = math.tanh %333 : vector<8x32xf32>
    %335 = arith.mulf %331, %297 : vector<8x32xf32>
    %336 = arith.mulf %330, %334 : vector<8x32xf32>
    %337 = arith.addf %335, %336 : vector<8x32xf32>
    %338 = math.tanh %337 : vector<8x32xf32>
    %339 = arith.mulf %332, %338 : vector<8x32xf32>
    %340 = tpu.concatenate %339, %339, %339, %339 in 1 : vector<8x32xf32>, vector<8x32xf32>, vector<8x32xf32>, vector<8x32xf32> -> vector<8x128xf32>
    %341 = arith.mulf %340, %4 : vector<8x128xf32>
    %342 = vector.shape_cast %341 : vector<8x128xf32> to vector<4x2x128xf32>
    %cst_49 = arith.constant dense<0.000000e+00> : vector<2x128xf32>
    %343 = vector.multi_reduction <add>, %342, %cst_49 [0] : vector<4x2x128xf32> to vector<2x128xf32>
    %cst_50 = arith.constant dense<0.000000e+00> : vector<2x4xf32>
    %344 = tpu.matmul %343, %7, %cst_50 {dimension_numbers = #tpu.dot_dimension_numbers<[1], [0], [0], [1], [0, 0, 1, 1], [], []>} : vector<2x128xf32>, vector<128x4xf32>, vector<2x4xf32> -> vector<2x4xf32>
    %345 = vector.broadcast %11 : vector<1x4xf32> to vector<2x4xf32>
    %346 = arith.addf %344, %345 : vector<2x4xf32>
    %cst_51 = arith.constant dense<0xFF800000> : vector<2xf32>
    %347 = vector.multi_reduction <maximumf>, %346, %cst_51 [1] : vector<2x4xf32> to vector<2xf32>
    %348 = vector.shape_cast %347 : vector<2xf32> to vector<2x1xf32>
    %349 = vector.broadcast %348 : vector<2x1xf32> to vector<2x4xf32>
    %350 = arith.subf %346, %349 : vector<2x4xf32>
    %351 = math.exp %350 : vector<2x4xf32>
    %cst_52 = arith.constant dense<0.000000e+00> : vector<2xf32>
    %352 = vector.multi_reduction <add>, %351, %cst_52 [1] : vector<2x4xf32> to vector<2xf32>
    %353 = vector.shape_cast %352 : vector<2xf32> to vector<2x1xf32>
    %354 = tpu.reciprocal %353 {approx = true} : vector<2x1xf32> -> vector<2x1xf32>
    %355 = vector.broadcast %354 : vector<2x1xf32> to vector<2x4xf32>
    %356 = arith.mulf %351, %355 : vector<2x4xf32>
    %cst_53 = arith.constant dense<0.000000e+00> : vector<2x128xf32>
    %357 = tpu.matmul %356, %5, %cst_53 {dimension_numbers = #tpu.dot_dimension_numbers<[1], [0], [0], [1], [0, 0, 1, 1], [], []>} : vector<2x4xf32>, vector<4x128xf32>, vector<2x128xf32> -> vector<2x128xf32>
    %358 = arith.mulf %343, %357 : vector<2x128xf32>
    %359 = vector.extract_strided_slice %358 {offsets = [0, 0], sizes = [2, 32], strides = [1, 1]} : vector<2x128xf32> to vector<2x32xf32>
    %360 = vector.extract_strided_slice %358 {offsets = [0, 32], sizes = [2, 32], strides = [1, 1]} : vector<2x128xf32> to vector<2x32xf32>
    %361 = arith.addf %359, %360 : vector<2x32xf32>
    %362 = vector.extract_strided_slice %358 {offsets = [0, 64], sizes = [2, 32], strides = [1, 1]} : vector<2x128xf32> to vector<2x32xf32>
    %363 = arith.addf %361, %362 : vector<2x32xf32>
    %364 = vector.extract_strided_slice %358 {offsets = [0, 96], sizes = [2, 32], strides = [1, 1]} : vector<2x128xf32> to vector<2x32xf32>
    %365 = arith.addf %363, %364 : vector<2x32xf32>
    %cst_54 = arith.constant dense<0.000000e+00> : vector<2xf32>
    %366 = vector.multi_reduction <add>, %365, %cst_54 [1] : vector<2x32xf32> to vector<2xf32>
    %367 = vector.shape_cast %366 : vector<2xf32> to vector<2x1xf32>
    %cst_55 = arith.constant 3.200000e+01 : f32
    %368 = vector.broadcast %cst_55 : f32 to vector<2x1xf32>
    %369 = arith.divf %367, %368 : vector<2x1xf32>
    %370 = vector.broadcast %369 : vector<2x1xf32> to vector<2x32xf32>
    %371 = arith.subf %365, %370 : vector<2x32xf32>
    %372 = arith.mulf %371, %371 : vector<2x32xf32>
    %cst_56 = arith.constant dense<0.000000e+00> : vector<2xf32>
    %373 = vector.multi_reduction <add>, %372, %cst_56 [1] : vector<2x32xf32> to vector<2xf32>
    %374 = vector.shape_cast %373 : vector<2xf32> to vector<2x1xf32>
    %cst_57 = arith.constant 3.200000e+01 : f32
    %375 = vector.broadcast %cst_57 : f32 to vector<2x1xf32>
    %376 = arith.divf %374, %375 : vector<2x1xf32>
    %377 = vector.broadcast %369 : vector<2x1xf32> to vector<2x32xf32>
    %378 = arith.subf %365, %377 : vector<2x32xf32>
    %cst_58 = arith.constant 9.99999974E-6 : f32
    %379 = vector.broadcast %cst_58 : f32 to vector<2x1xf32>
    %380 = arith.addf %376, %379 : vector<2x1xf32>
    %381 = math.rsqrt %380 : vector<2x1xf32>
    %382 = vector.broadcast %381 : vector<2x1xf32> to vector<2x32xf32>
    %383 = arith.mulf %378, %382 : vector<2x32xf32>
    %384 = vector.broadcast %12 : vector<1x32xf32> to vector<2x32xf32>
    %385 = arith.mulf %383, %384 : vector<2x32xf32>
    %386 = vector.broadcast %13 : vector<1x32xf32> to vector<2x32xf32>
    %387 = arith.addf %385, %386 : vector<2x32xf32>
    %cst_59 = arith.constant dense<0.000000e+00> : vector<2x16xf32>
    %388 = tpu.matmul %387, %8, %cst_59 {dimension_numbers = #tpu.dot_dimension_numbers<[1], [0], [0], [1], [0, 0, 1, 1], [], []>} : vector<2x32xf32>, vector<32x16xf32>, vector<2x16xf32> -> vector<2x16xf32>
    %389 = vector.broadcast %14 : vector<1x16xf32> to vector<2x16xf32>
    %390 = arith.addf %388, %389 : vector<2x16xf32>
    %cst_60 = arith.constant 0.000000e+00 : f32
    %391 = vector.broadcast %cst_60 : f32 to vector<2x16xf32>
    %392 = arith.maximumf %390, %391 : vector<2x16xf32>
    %cst_61 = arith.constant dense<0.000000e+00> : vector<2x1xf32>
    %393 = tpu.matmul %392, %9, %cst_61 {dimension_numbers = #tpu.dot_dimension_numbers<[1], [0], [0], [1], [0, 0, 1, 1], [], []>} : vector<2x16xf32>, vector<16x1xf32>, vector<2x1xf32> -> vector<2x1xf32>
    %394 = vector.broadcast %15 : vector<1x1xf32> to vector<2x1xf32>
    %395 = arith.addf %393, %394 : vector<2x1xf32>
    %c0_62 = arith.constant 0 : index
    %c0_63 = arith.constant 0 : index
    %396 = vector.load %arg5[%c0_62, %c0_63] : memref<2x1xf32, #tpu.memory_space<vmem>>, vector<2x1xf32>
    tpu.vector_store %arg5[%c0_62, %c0_63], %395 {strides = array<i32>} : memref<2x1xf32, #tpu.memory_space<vmem>>, vector<2x1xf32>,
    return
  }
}

</mosaic_0001>

<llo_original>
// kernel: mi_lstm_forward.1
$region0: #{mi_lstm_forward.1}
  #allocation0 [shape = 'u32[]', space=smem, size = 0x4, offset = 0x4, fixed_abs, tag = 'smem constant byte address 0x4 - core index']
  #allocation1 [shape = 'u32[144,128]{1,0:T(1,128)}', space=vmem, size = 0x12000, scoped, tag = 'internal scratch']
  %s0 = inlined_call_operand.vmem [shape: f32[64,32], index: 0, kind: input, shape index: {}]
  %s1 = inlined_call_operand.vmem [shape: f32[416,128], index: 1, kind: input, shape index: {}]
  %s2 = inlined_call_operand.vmem [shape: f32[20,128], index: 2, kind: input, shape index: {}]
  %s3 = inlined_call_operand.vmem [shape: f32[128,21], index: 3, kind: input, shape index: {}]
  %s4 = inlined_call_operand.vmem [shape: f32[1,85], index: 4, kind: input, shape index: {}]
  %s5 = inlined_call_operand.vmem [shape: f32[2,1], index: 5, kind: output, shape index: {}]
  %s6 = sld [smem:[#allocation0]]
  $region30: #{mi_lstm_forward.1} parent=0
    _
  %s8 = ssub.s32 1, %s6
  %s9 = scalar_select 0, %s8, %s6
  // Predicated region
  $region2: #{mi_lstm_forward.1} parent=0 // pred_check
    _
  $region3: #{mi_lstm_forward.1} parent=0 // pred_check_branch
    %11 = sbr.rel (0) target = $region5
  $region4: #{mi_lstm_forward.1} parent=0 // pred_region
    _
  $region5: #{mi_lstm_forward.1} parent=0 // pred_fallthru
    _
  // Predicated region
  $region6: #{mi_lstm_forward.1} parent=0 // pred_check
    _
  $region7: #{mi_lstm_forward.1} parent=0 // pred_check_branch
    %13 = sbr.rel (0) target = $region9
  $region8: #{mi_lstm_forward.1} parent=0 // pred_region
    _
  $region9: #{mi_lstm_forward.1} parent=0 // pred_fallthru
    _
  // Predicated region
  $region10: #{mi_lstm_forward.1} parent=0 // pred_check
    _
  $region11: #{mi_lstm_forward.1} parent=0 // pred_check_branch
    %15 = sbr.rel (0) target = $region13
  $region12: #{mi_lstm_forward.1} parent=0 // pred_region
    _
  $region13: #{mi_lstm_forward.1} parent=0 // pred_fallthru
    _
  // Predicated region
  $region14: #{mi_lstm_forward.1} parent=0 // pred_check
    _
  $region15: #{mi_lstm_forward.1} parent=0 // pred_check_branch
    %17 = sbr.rel (0) target = $region17
  $region16: #{mi_lstm_forward.1} parent=0 // pred_region
    _
  $region17: #{mi_lstm_forward.1} parent=0 // pred_fallthru
    _
  // Predicated region
  $region18: #{mi_lstm_forward.1} parent=0 // pred_check
    _
  $region19: #{mi_lstm_forward.1} parent=0 // pred_check_branch
    %19 = sbr.rel (0) target = $region21
  $region20: #{mi_lstm_forward.1} parent=0 // pred_region
    _
  $region21: #{mi_lstm_forward.1} parent=0 // pred_fallthru
    _
  %v20 = vld [vmem:[%s1] sm:$0xff]
  %v21 = vld [vmem:[%s1 + $0x8] sm:$0xff]
  %v22 = vld [vmem:[%s1 + $0x10] sm:$0xff]
  %v23 = vld [vmem:[%s1 + $0x18] sm:$0xff]
  %v24 = vld [vmem:[%s1 + $0x20] sm:$0xff]
  %v25 = vld [vmem:[%s1 + $0x28] sm:$0xff]
  %v26 = vld [vmem:[%s1 + $0x30] sm:$0xff]
  %v27 = vld [vmem:[%s1 + $0x38] sm:$0xff]
  %v28 = vld [vmem:[%s1 + $0x40] sm:$0xff]
  %v29 = vld [vmem:[%s1 + $0x48] sm:$0xff]
  %v30 = vld [vmem:[%s1 + $0x50] sm:$0xff]
  %v31 = vld [vmem:[%s1 + $0x58] sm:$0xff]
  %v32 = vld [vmem:[%s1 + $0x60] sm:$0xff]
  %v33 = vld [vmem:[%s1 + $0x68] sm:$0xff]
  %v34 = vld [vmem:[%s1 + $0x70] sm:$0xff]
  %v35 = vld [vmem:[%s1 + $0x78] sm:$0xff]
  %v36 = vld [vmem:[%s1 + $0x80] sm:$0xff]
  %v37 = vld [vmem:[%s1 + $0x88] sm:$0xff]
  %v38 = vld [vmem:[%s1 + $0x90] sm:$0xff]
  %v39 = vld [vmem:[%s1 + $0x98] sm:$0xff]
  %v40 = vld [vmem:[%s1 + $0xa0] sm:$0xff]
  %v41 = vld [vmem:[%s1 + $0xa8] sm:$0xff]
  %v42 = vld [vmem:[%s1 + $0xb0] sm:$0xff]
  %v43 = vld [vmem:[%s1 + $0xb8] sm:$0xff]
  %v44 = vld [vmem:[%s1 + $0xc0] sm:$0xff]
  %v45 = vld [vmem:[%s1 + $0xc8] sm:$0xff]
  %v46 = vld [vmem:[%s1 + $0xd0] sm:$0xff]
  %v47 = vld [vmem:[%s1 + $0xd8] sm:$0xff]
  %v48 = vld [vmem:[%s1 + $0xe0] sm:$0xff]
  %v49 = vld [vmem:[%s1 + $0xe8] sm:$0xff]
  %v50 = vld [vmem:[%s1 + $0xf0] sm:$0xff]
  %v51 = vld [vmem:[%s1 + $0xf8] sm:$0xff]
  %v52 = vld [vmem:[%s1 + $0x100] sm:$0xff]
  %v53 = vld [vmem:[%s1 + $0x108] sm:$0xff]
  %v54 = vld [vmem:[%s1 + $0x110] sm:$0xff]
  %v55 = vld [vmem:[%s1 + $0x118] sm:$0xff]
  %v56 = vld [vmem:[%s1 + $0x120] sm:$0xff]
  %v57 = vld [vmem:[%s1 + $0x128] sm:$0xff]
  %v58 = vld [vmem:[%s1 + $0x130] sm:$0xff]
  %v59 = vld [vmem:[%s1 + $0x138] sm:$0xff]
  %v60 = vld [vmem:[%s1 + $0x140] sm:$0xff]
  %v61 = vld [vmem:[%s1 + $0x148] sm:$0xff]
  %v62 = vld [vmem:[%s1 + $0x150] sm:$0xff]
  %v63 = vld [vmem:[%s1 + $0x158] sm:$0xff]
  %v64 = vld [vmem:[%s1 + $0x160] sm:$0xff]
  %v65 = vld [vmem:[%s1 + $0x168] sm:$0xff]
  %v66 = vld [vmem:[%s1 + $0x170] sm:$0xff]
  %v67 = vld [vmem:[%s1 + $0x178] sm:$0xff]
  %v68 = vld [vmem:[%s1 + $0x180] sm:$0xff]
  %v69 = vld [vmem:[%s1 + $0x188] sm:$0xff]
  %v70 = vld [vmem:[%s1 + $0x190] sm:$0xff]
  %v71 = vld [vmem:[%s1 + $0x198] sm:$0xff]
  %v72 = vld [vmem:[%s2] sm:$0xff]
  %v73 = vld [vmem:[%s2 + $0x8] sm:$0xff]
  %v74 = vld [vmem:[%s2 + $0x10] sm:$0xf]
  %v75 = vld [vmem:[%s3] sm:$0xff]
  %v76 = vld [vmem:[%s3 + $0x8] sm:$0xff]
  %v77 = vld [vmem:[%s3 + $0x10] sm:$0xff]
  %v78 = vld [vmem:[%s3 + $0x18] sm:$0xff]
  %v79 = vld [vmem:[%s3 + $0x20] sm:$0xff]
  %v80 = vld [vmem:[%s3 + $0x28] sm:$0xff]
  %v81 = vld [vmem:[%s3 + $0x30] sm:$0xff]
  %v82 = vld [vmem:[%s3 + $0x38] sm:$0xff]
  %v83 = vld [vmem:[%s3 + $0x40] sm:$0xff]
  %v84 = vld [vmem:[%s3 + $0x48] sm:$0xff]
  %v85 = vld [vmem:[%s3 + $0x50] sm:$0xff]
  %v86 = vld [vmem:[%s3 + $0x58] sm:$0xff]
  %v87 = vld [vmem:[%s3 + $0x60] sm:$0xff]
  %v88 = vld [vmem:[%s3 + $0x68] sm:$0xff]
  %v89 = vld [vmem:[%s3 + $0x70] sm:$0xff]
  %v90 = vld [vmem:[%s3 + $0x78] sm:$0xff]
  %v91 = vld [vmem:[%s4] sm:$0x1]
  %v92 = vld [vmem:[%s0] sm:$0xff]
  %v93 = vld [vmem:[%s0 + $0x8] sm:$0xff]
  %v94 = vld [vmem:[%s0 + $0x10] sm:$0xff]
  %v95 = vld [vmem:[%s0 + $0x18] sm:$0xff]
  %v96 = vld [vmem:[%s0 + $0x20] sm:$0xff]
  %v97 = vld [vmem:[%s0 + $0x28] sm:$0xff]
  %v98 = vld [vmem:[%s0 + $0x30] sm:$0xff]
  %v99 = vld [vmem:[%s0 + $0x38] sm:$0xff]
  %vm100 = vcmask 261120
  %v102 = vsel %vm100, %v92, 0
  %v105 = vsel %vm100, %v93, 0
  %v108 = vsel %vm100, %v94, 0
  %v111 = vsel %vm100, %v95, 0
  %v114 = vsel %vm100, %v96, 0
  %v117 = vsel %vm100, %v97, 0
  %v120 = vsel %vm100, %v98, 0
  %v123 = vsel %vm100, %v99, 0
  %125 = vmatprep.subr.mxu0 0.0
  %126 = vmatpush1.msra.mxu0 %v68
  %127 = vmatprep.subr.mxu0 0.0
  %128 = vmatpush1.msra.mxu0 %v69
  %129 = vmatprep.subr.mxu0 0.0
  %130 = vmatpush1.msra.mxu0 %v70
  %131 = vmatprep.subr.mxu0 0.0
  %132 = vmatpush1.msra.mxu0 %v71
  %133 = vmatprep.subr.mxu0 0.0
  %134 = vmatpush1.msra.mxu0 0.0
  %135 = vmatprep.subr.mxu0 0.0
  %136 = vmatpush1.msra.mxu0 0.0
  %137 = vmatprep.subr.mxu0 0.0
  %138 = vmatpush1.msra.mxu0 0.0
  %139 = vmatprep.subr.mxu0 0.0
  %140 = vmatpush1.msra.mxu0 0.0
  %141 = vmatprep.subr.mxu0 0.0
  %142 = vmatpush1.msra.mxu0 0.0
  %143 = vmatprep.subr.mxu0 0.0
  %144 = vmatpush1.msra.mxu0 0.0
  %145 = vmatprep.subr.mxu0 0.0
  %146 = vmatpush1.msra.mxu0 0.0
  %147 = vmatprep.subr.mxu0 0.0
  %148 = vmatpush1.msra.mxu0 0.0
  %149 = vmatprep.subr.mxu0 0.0
  %150 = vmatpush1.msra.mxu0 0.0
  %151 = vmatprep.subr.mxu0 0.0
  %152 = vmatpush1.msra.mxu0 0.0
  %153 = vmatprep.subr.mxu0 0.0
  %154 = vmatpush1.msra.mxu0 0.0
  %155 = vmatprep.subr.mxu0 0.0
  %156 = vmatpush1.msra.mxu0 0.0
  %157 = vmatprep.subr.mxu0 0.0
  %158 = vmatpush1.msra.mxu0 0.0
  %159 = vmatprep.subr.mxu0 0.0
  %160 = vmatpush1.msra.mxu0 0.0
  %161 = vmatprep.subr.mxu0 0.0
  %162 = vmatpush1.msra.mxu0 0.0
  %163 = vmatprep.subr.mxu0 0.0
  %164 = vmatpush1.msra.mxu0 0.0
  %165 = vmatprep.subr.mxu0 0.0
  %166 = vmatpush1.msra.mxu0 0.0
  %167 = vmatprep.subr.mxu0 0.0
  %168 = vmatpush1.msra.mxu0 0.0
  %169 = vmatprep.subr.mxu0 0.0
  %170 = vmatpush1.msra.mxu0 0.0
  %171 = vmatprep.subr.mxu0 0.0
  %172 = vmatpush1.msra.mxu0 0.0
  %173 = vmatprep.subr.mxu0 0.0
  %174 = vmatpush1.msra.mxu0 0.0
  %175 = vmatprep.subr.mxu0 0.0
  %176 = vmatpush1.msra.mxu0 0.0
  %177 = vmatprep.subr.mxu0 0.0
  %178 = vmatpush1.msra.mxu0 0.0
  %179 = vmatprep.subr.mxu0 0.0
  %180 = vmatpush1.msra.mxu0 0.0
  %181 = vmatprep.subr.mxu0 0.0
  %182 = vmatpush1.msra.mxu0 0.0
  %183 = vmatprep.subr.mxu0 0.0
  %184 = vmatpush1.msra.mxu0 0.0
  %185 = vmatprep.subr.mxu0 0.0
  %186 = vmatpush1.msra.mxu0 0.0
  %187 = vmatprep.subr.mxu0 0.0
  %188 = vmatpush1.msra.mxu0 0.0
  %189 = vmatprep.mubr.f32.mxu0 0.0
  %190 = vmatmul.mubr.f32.gmra.mrb[0].mxu0 %v102
  %v191 = vpop.f32.mrb[0].mxu0
  %v192 = vadd.f32 0.0, %v191
  %v193 = vpop.f32.mrb[0].mxu0
  %194 = vmatprep.mubr.f32.mxu0 0.0
  %195 = vmatmul.mubr.f32.gmra.mrb[0].mxu0 %v105
  %v196 = vpop.f32.mrb[0].mxu0
  %v197 = vadd.f32 0.0, %v196
  %v198 = vpop.f32.mrb[0].mxu0
  %199 = vmatprep.mubr.f32.mxu0 0.0
  %200 = vmatmul.mubr.f32.gmra.mrb[0].mxu0 %v108
  %v201 = vpop.f32.mrb[0].mxu0
  %v202 = vadd.f32 0.0, %v201
  %v203 = vpop.f32.mrb[0].mxu0
  %204 = vmatprep.mubr.f32.mxu0 0.0
  %205 = vmatmul.mubr.f32.gmra.mrb[0].mxu0 %v111
  %v206 = vpop.f32.mrb[0].mxu0
  %v207 = vadd.f32 0.0, %v206
  %v208 = vpop.f32.mrb[0].mxu0
  %209 = vmatprep.mubr.f32.mxu0 0.0
  %210 = vmatmul.mubr.f32.gmra.mrb[0].mxu0 %v114
  %v211 = vpop.f32.mrb[0].mxu0
  %v212 = vadd.f32 0.0, %v211
  %v213 = vpop.f32.mrb[0].mxu0
  %214 = vmatprep.mubr.f32.mxu0 0.0
  %215 = vmatmul.mubr.f32.gmra.mrb[0].mxu0 %v117
  %v216 = vpop.f32.mrb[0].mxu0
  %v217 = vadd.f32 0.0, %v216
  %v218 = vpop.f32.mrb[0].mxu0
  %219 = vmatprep.mubr.f32.mxu0 0.0
  %220 = vmatmul.mubr.f32.gmra.mrb[0].mxu0 %v120
  %v221 = vpop.f32.mrb[0].mxu0
  %v222 = vadd.f32 0.0, %v221
  %v223 = vpop.f32.mrb[0].mxu0
  %224 = vmatprep.mubr.f32.mxu0 0.0
  %225 = vmatmul.mubr.f32.gmra.mrb[0].mxu0 %v123
  %v226 = vpop.f32.mrb[0].mxu0
  %v227 = vadd.f32 0.0, %v226
  %v228 = vpop.f32.mrb[0].mxu0
  %229 = vdwg.mxu0
  %230 = vmatprep.subr.mxu0 0.0
  %231 = vmatpush1.msra.mxu0 %v20
  %232 = vmatprep.subr.mxu0 0.0
  %233 = vmatpush1.msra.mxu0 %v21
  %234 = vmatprep.subr.mxu0 0.0
  %235 = vmatpush1.msra.mxu0 %v22
  %236 = vmatprep.subr.mxu0 0.0
  %237 = vmatpush1.msra.mxu0 %v23
  %238 = vmatprep.subr.mxu0 0.0
  %239 = vmatpush1.msra.mxu0 %v24
  %240 = vmatprep.subr.mxu0 0.0
  %241 = vmatpush1.msra.mxu0 %v25
  %242 = vmatprep.subr.mxu0 0.0
  %243 = vmatpush1.msra.mxu0 %v26
  %244 = vmatprep.subr.mxu0 0.0
  %245 = vmatpush1.msra.mxu0 %v27
  %246 = vmatprep.subr.mxu0 0.0
  %247 = vmatpush1.msra.mxu0 %v28
  %248 = vmatprep.subr.mxu0 0.0
  %249 = vmatpush1.msra.mxu0 %v29
  %250 = vmatprep.subr.mxu0 0.0
  %251 = vmatpush1.msra.mxu0 %v30
  %252 = vmatprep.subr.mxu0 0.0
  %253 = vmatpush1.msra.mxu0 %v31
  %254 = vmatprep.subr.mxu0 0.0
  %255 = vmatpush1.msra.mxu0 %v32
  %256 = vmatprep.subr.mxu0 0.0
  %257 = vmatpush1.msra.mxu0 %v33
  %258 = vmatprep.subr.mxu0 0.0
  %259 = vmatpush1.msra.mxu0 %v34
  %260 = vmatprep.subr.mxu0 0.0
  %261 = vmatpush1.msra.mxu0 %v35
  %262 = vmatprep.subr.mxu0 0.0
  %263 = vmatpush1.msra.mxu0 0.0
  %264 = vmatprep.subr.mxu0 0.0
  %265 = vmatpush1.msra.mxu0 0.0
  %266 = vmatprep.subr.mxu0 0.0
  %267 = vmatpush1.msra.mxu0 0.0
  %268 = vmatprep.subr.mxu0 0.0
  %269 = vmatpush1.msra.mxu0 0.0
  %270 = vmatprep.subr.mxu0 0.0
  %271 = vmatpush1.msra.mxu0 0.0
  %272 = vmatprep.subr.mxu0 0.0
  %273 = vmatpush1.msra.mxu0 0.0
  %274 = vmatprep.subr.mxu0 0.0
  %275 = vmatpush1.msra.mxu0 0.0
  %276 = vmatprep.subr.mxu0 0.0
  %277 = vmatpush1.msra.mxu0 0.0
  %278 = vmatprep.subr.mxu0 0.0
  %279 = vmatpush1.msra.mxu0 0.0
  %280 = vmatprep.subr.mxu0 0.0
  %281 = vmatpush1.msra.mxu0 0.0
  %282 = vmatprep.subr.mxu0 0.0
  %283 = vmatpush1.msra.mxu0 0.0
  %284 = vmatprep.subr.mxu0 0.0
  %285 = vmatpush1.msra.mxu0 0.0
  %286 = vmatprep.subr.mxu0 0.0
  %287 = vmatpush1.msra.mxu0 0.0
  %288 = vmatprep.subr.mxu0 0.0
  %289 = vmatpush1.msra.mxu0 0.0
  %290 = vmatprep.subr.mxu0 0.0
  %291 = vmatpush1.msra.mxu0 0.0
  %292 = vmatprep.subr.mxu0 0.0
  %293 = vmatpush1.msra.mxu0 0.0
  %294 = vmatprep.mubr.f32.mxu0 0.0
  %295 = vmatmul.mubr.f32.gmra.mrb[0].mxu0 0.0
  %v296 = vpop.f32.mrb[0].mxu0
  %v297 = vadd.f32 0.0, %v296
  %v298 = vpop.f32.mrb[0].mxu0
  %299 = vdwg.mxu0
  %v300 = vadd.f32 %v192, %v297
  %v301 = vxor.u32 %v300, 2147483648
  %v302 = vmul.f32 %v301, 1.442695
  %v303 = vpow.pop %v302
  %v304 = vadd.f32 %v303, 1.0
  %v305 = vrcp.pop %v304
  %v306 = vmul.f32 1.0, %v305
  %v307 = vtanh.pop %v300
  %v308 = vmul.f32 %v306, 0.0
  %310 = vrot.lane.b32.xlu0 %v307, 64
  %v311 = vpop.permute.xlu0 %310
  %v313 = vmul.f32 %v306, %v311
  %315 = vrot.lane.b32.xlu0 %v313, 32
  %v316 = vpop.permute.xlu0 %315
  %v318 = vadd.f32 %v308, %v316
  %v319 = vtanh.pop %v318
  %321 = vrot.lane.b32.xlu0 %v319, 64
  %v322 = vpop.permute.xlu0 %321
  %v324 = vmul.f32 %v306, %v322
  %326 = vrot.lane.b32.xlu0 %v324, 32
  %v327 = vpop.permute.xlu0 %326
  %329 = vrot.lane.b32.xlu0 %v324, 64
  %v330 = vpop.permute.xlu0 %329
  %332 = vrot.lane.b32.xlu0 %v324, 96
  %v333 = vpop.permute.xlu0 %332
  %v335 = vsel %vm100, %v327, %v330
  %vm336 = vcmask 523264
  %v337 = vsel %vm336, %v335, %v333
  %vm338 = vcmask 785408
  %v339 = vsel %vm338, %v337, %v324
  %v340 = vmul.f32 %v339, %v73
  %341 = vmatprep.subr.mxu0 0.0
  %342 = vmatpush1.msra.mxu0 %v36
  %343 = vmatprep.subr.mxu0 0.0
  %344 = vmatpush1.msra.mxu0 %v37
  %345 = vmatprep.subr.mxu0 0.0
  %346 = vmatpush1.msra.mxu0 %v38
  %347 = vmatprep.subr.mxu0 0.0
  %348 = vmatpush1.msra.mxu0 %v39
  %349 = vmatprep.subr.mxu0 0.0
  %350 = vmatpush1.msra.mxu0 %v40
  %351 = vmatprep.subr.mxu0 0.0
  %352 = vmatpush1.msra.mxu0 %v41
  %353 = vmatprep.subr.mxu0 0.0
  %354 = vmatpush1.msra.mxu0 %v42
  %355 = vmatprep.subr.mxu0 0.0
  %356 = vmatpush1.msra.mxu0 %v43
  %357 = vmatprep.subr.mxu0 0.0
  %358 = vmatpush1.msra.mxu0 %v44
  %359 = vmatprep.subr.mxu0 0.0
  %360 = vmatpush1.msra.mxu0 %v45
  %361 = vmatprep.subr.mxu0 0.0
  %362 = vmatpush1.msra.mxu0 %v46
  %363 = vmatprep.subr.mxu0 0.0
  %364 = vmatpush1.msra.mxu0 %v47
  %365 = vmatprep.subr.mxu0 0.0
  %366 = vmatpush1.msra.mxu0 %v48
  %367 = vmatprep.subr.mxu0 0.0
  %368 = vmatpush1.msra.mxu0 %v49
  %369 = vmatprep.subr.mxu0 0.0
  %370 = vmatpush1.msra.mxu0 %v50
  %371 = vmatprep.subr.mxu0 0.0
  %372 = vmatpush1.msra.mxu0 %v51
  %373 = vmatprep.subr.mxu0 0.0
  %374 = vmatpush1.msra.mxu0 %v52
  %375 = vmatprep.subr.mxu0 0.0
  %376 = vmatpush1.msra.mxu0 %v53
  %377 = vmatprep.subr.mxu0 0.0
  %378 = vmatpush1.msra.mxu0 %v54
  %379 = vmatprep.subr.mxu0 0.0
  %380 = vmatpush1.msra.mxu0 %v55
  %381 = vmatprep.subr.mxu0 0.0
  %382 = vmatpush1.msra.mxu0 %v56
  %383 = vmatprep.subr.mxu0 0.0
  %384 = vmatpush1.msra.mxu0 %v57
  %385 = vmatprep.subr.mxu0 0.0
  %386 = vmatpush1.msra.mxu0 %v58
  %387 = vmatprep.subr.mxu0 0.0
  %388 = vmatpush1.msra.mxu0 %v59
  %389 = vmatprep.subr.mxu0 0.0
  %390 = vmatpush1.msra.mxu0 %v60
  %391 = vmatprep.subr.mxu0 0.0
  %392 = vmatpush1.msra.mxu0 %v61
  %393 = vmatprep.subr.mxu0 0.0
  %394 = vmatpush1.msra.mxu0 %v62
  %395 = vmatprep.subr.mxu0 0.0
  %396 = vmatpush1.msra.mxu0 %v63
  %397 = vmatprep.subr.mxu0 0.0
  %398 = vmatpush1.msra.mxu0 %v64
  %399 = vmatprep.subr.mxu0 0.0
  %400 = vmatpush1.msra.mxu0 %v65
  %401 = vmatprep.subr.mxu0 0.0
  %402 = vmatpush1.msra.mxu0 %v66
  %403 = vmatprep.subr.mxu0 0.0
  %404 = vmatpush1.msra.mxu0 %v67
  %405 = vmatprep.mubr.f32.mxu0 0.0
  %406 = vmatmul.mubr.f32.gmra.mrb[0].mxu0 %v340
  %v407 = vpop.f32.mrb[0].mxu0
  %v408 = vadd.f32 %v72, %v407
  %v409 = vpop.f32.mrb[0].mxu0
  %410 = vdwg.mxu0
  %v411 = vxor.u32 %v408, 2147483648
  %v412 = vmul.f32 %v411, 1.442695
  %v413 = vpow.pop %v412
  %v414 = vadd.f32 %v413, 1.0
  %v415 = vrcp.pop %v414
  %v416 = vmul.f32 1.0, %v415
  %v417 = vtanh.pop %v408
  %v418 = vmul.f32 %v416, 0.0
  %420 = vrot.lane.b32.xlu0 %v417, 64
  %v421 = vpop.permute.xlu0 %420
  %v423 = vmul.f32 %v416, %v421
  %425 = vrot.lane.b32.xlu0 %v423, 32
  %v426 = vpop.permute.xlu0 %425
  %v428 = vadd.f32 %v418, %v426
  %v429 = vtanh.pop %v428
  %431 = vrot.lane.b32.xlu0 %v429, 64
  %v432 = vpop.permute.xlu0 %431
  %v434 = vmul.f32 %v416, %v432
  %436 = vrot.lane.b32.xlu0 %v434, 32
  %v437 = vpop.permute.xlu0 %436
  %439 = vrot.lane.b32.xlu0 %v434, 64
  %v440 = vpop.permute.xlu0 %439
  %442 = vrot.lane.b32.xlu0 %v434, 96
  %v443 = vpop.permute.xlu0 %442
  %v445 = vsel %vm100, %v437, %v440
  %v446 = vsel %vm336, %v445, %v443
  %v447 = vsel %vm338, %v446, %v434
  %v448 = vmul.f32 %v447, %v73
  %449 = vmatprep.subr.mxu0 0.0
  %450 = vmatpush1.msra.mxu0 %v20
  %451 = vmatprep.subr.mxu0 0.0
  %452 = vmatpush1.msra.mxu0 %v21
  %453 = vmatprep.subr.mxu0 0.0
  %454 = vmatpush1.msra.mxu0 %v22
  %455 = vmatprep.subr.mxu0 0.0
  %456 = vmatpush1.msra.mxu0 %v23
  %457 = vmatprep.subr.mxu0 0.0
  %458 = vmatpush1.msra.mxu0 %v24
  %459 = vmatprep.subr.mxu0 0.0
  %460 = vmatpush1.msra.mxu0 %v25
  %461 = vmatprep.subr.mxu0 0.0
  %462 = vmatpush1.msra.mxu0 %v26
  %463 = vmatprep.subr.mxu0 0.0
  %464 = vmatpush1.msra.mxu0 %v27
  %465 = vmatprep.subr.mxu0 0.0
  %466 = vmatpush1.msra.mxu0 %v28
  %467 = vmatprep.subr.mxu0 0.0
  %468 = vmatpush1.msra.mxu0 %v29
  %469 = vmatprep.subr.mxu0 0.0
  %470 = vmatpush1.msra.mxu0 %v30
  %471 = vmatprep.subr.mxu0 0.0
  %472 = vmatpush1.msra.mxu0 %v31
  %473 = vmatprep.subr.mxu0 0.0
  %474 = vmatpush1.msra.mxu0 %v32
  %475 = vmatprep.subr.mxu0 0.0
  %476 = vmatpush1.msra.mxu0 %v33
  %477 = vmatprep.subr.mxu0 0.0
  %478 = vmatpush1.msra.mxu0 %v34
  %479 = vmatprep.subr.mxu0 0.0
  %480 = vmatpush1.msra.mxu0 %v35
  %481 = vmatprep.subr.mxu0 0.0
  %482 = vmatpush1.msra.mxu0 0.0
  %483 = vmatprep.subr.mxu0 0.0
  %484 = vmatpush1.msra.mxu0 0.0
  %485 = vmatprep.subr.mxu0 0.0
  %486 = vmatpush1.msra.mxu0 0.0
  %487 = vmatprep.subr.mxu0 0.0
  %488 = vmatpush1.msra.mxu0 0.0
  %489 = vmatprep.subr.mxu0 0.0
  %490 = vmatpush1.msra.mxu0 0.0
  %491 = vmatprep.subr.mxu0 0.0
  %492 = vmatpush1.msra.mxu0 0.0
  %493 = vmatprep.subr.mxu0 0.0
  %494 = vmatpush1.msra.mxu0 0.0
  %495 = vmatprep.subr.mxu0 0.0
  %496 = vmatpush1.msra.mxu0 0.0
  %497 = vmatprep.subr.mxu0 0.0
  %498 = vmatpush1.msra.mxu0 0.0
  %499 = vmatprep.subr.mxu0 0.0
  %500 = vmatpush1.msra.mxu0 0.0
  %501 = vmatprep.subr.mxu0 0.0
  %502 = vmatpush1.msra.mxu0 0.0
  %503 = vmatprep.subr.mxu0 0.0
  %504 = vmatpush1.msra.mxu0 0.0
  %505 = vmatprep.subr.mxu0 0.0
  %506 = vmatpush1.msra.mxu0 0.0
  %507 = vmatprep.subr.mxu0 0.0
  %508 = vmatpush1.msra.mxu0 0.0
  %509 = vmatprep.subr.mxu0 0.0
  %510 = vmatpush1.msra.mxu0 0.0
  %511 = vmatprep.subr.mxu0 0.0
  %512 = vmatpush1.msra.mxu0 0.0
  %513 = vmatprep.mubr.f32.mxu0 0.0
  %514 = vmatmul.mubr.f32.gmra.mrb[0].mxu0 %v340
  %v515 = vpop.f32.mrb[0].mxu0
  %v516 = vadd.f32 0.0, %v515
  %v517 = vpop.f32.mrb[0].mxu0
  %518 = vdwg.mxu0
  %v519 = vadd.f32 %v197, %v516
  %v520 = vxor.u32 %v519, 2147483648
  %v521 = vmul.f32 %v520, 1.442695
  %v522 = vpow.pop %v521
  %v523 = vadd.f32 %v522, 1.0
  %v524 = vrcp.pop %v523
  %v525 = vmul.f32 1.0, %v524
  %v526 = vtanh.pop %v519
  %v527 = vmul.f32 %v525, %v318
  %529 = vrot.lane.b32.xlu0 %v526, 64
  %v530 = vpop.permute.xlu0 %529
  %v532 = vmul.f32 %v525, %v530
  %534 = vrot.lane.b32.xlu0 %v532, 32
  %v535 = vpop.permute.xlu0 %534
  %v537 = vadd.f32 %v527, %v535
  %v538 = vtanh.pop %v537
  %540 = vrot.lane.b32.xlu0 %v538, 64
  %v541 = vpop.permute.xlu0 %540
  %v543 = vmul.f32 %v525, %v541
  %545 = vrot.lane.b32.xlu0 %v543, 32
  %v546 = vpop.permute.xlu0 %545
  %548 = vrot.lane.b32.xlu0 %v543, 64
  %v549 = vpop.permute.xlu0 %548
  %551 = vrot.lane.b32.xlu0 %v543, 96
  %v552 = vpop.permute.xlu0 %551
  %v554 = vsel %vm100, %v546, %v549
  %v555 = vsel %vm336, %v554, %v552
  %v556 = vsel %vm338, %v555, %v543
  %v557 = vmul.f32 %v556, %v73
  %558 = vmatprep.subr.mxu0 0.0
  %559 = vmatpush1.msra.mxu0 %v36
  %560 = vmatprep.subr.mxu0 0.0
  %561 = vmatpush1.msra.mxu0 %v37
  %562 = vmatprep.subr.mxu0 0.0
  %563 = vmatpush1.msra.mxu0 %v38
  %564 = vmatprep.subr.mxu0 0.0
  %565 = vmatpush1.msra.mxu0 %v39
  %566 = vmatprep.subr.mxu0 0.0
  %567 = vmatpush1.msra.mxu0 %v40
  %568 = vmatprep.subr.mxu0 0.0
  %569 = vmatpush1.msra.mxu0 %v41
  %570 = vmatprep.subr.mxu0 0.0
  %571 = vmatpush1.msra.mxu0 %v42
  %572 = vmatprep.subr.mxu0 0.0
  %573 = vmatpush1.msra.mxu0 %v43
  %574 = vmatprep.subr.mxu0 0.0
  %575 = vmatpush1.msra.mxu0 %v44
  %576 = vmatprep.subr.mxu0 0.0
  %577 = vmatpush1.msra.mxu0 %v45
  %578 = vmatprep.subr.mxu0 0.0
  %579 = vmatpush1.msra.mxu0 %v46
  %580 = vmatprep.subr.mxu0 0.0
  %581 = vmatpush1.msra.mxu0 %v47
  %582 = vmatprep.subr.mxu0 0.0
  %583 = vmatpush1.msra.mxu0 %v48
  %584 = vmatprep.subr.mxu0 0.0
  %585 = vmatpush1.msra.mxu0 %v49
  %586 = vmatprep.subr.mxu0 0.0
  %587 = vmatpush1.msra.mxu0 %v50
  %588 = vmatprep.subr.mxu0 0.0
  %589 = vmatpush1.msra.mxu0 %v51
  %590 = vmatprep.subr.mxu0 0.0
  %591 = vmatpush1.msra.mxu0 %v52
  %592 = vmatprep.subr.mxu0 0.0
  %593 = vmatpush1.msra.mxu0 %v53
  %594 = vmatprep.subr.mxu0 0.0
  %595 = vmatpush1.msra.mxu0 %v54
  %596 = vmatprep.subr.mxu0 0.0
  %597 = vmatpush1.msra.mxu0 %v55
  %598 = vmatprep.subr.mxu0 0.0
  %599 = vmatpush1.msra.mxu0 %v56
  %600 = vmatprep.subr.mxu0 0.0
  %601 = vmatpush1.msra.mxu0 %v57
  %602 = vmatprep.subr.mxu0 0.0
  %603 = vmatpush1.msra.mxu0 %v58
  %604 = vmatprep.subr.mxu0 0.0
  %605 = vmatpush1.msra.mxu0 %v59
  %606 = vmatprep.subr.mxu0 0.0
  %607 = vmatpush1.msra.mxu0 %v60
  %608 = vmatprep.subr.mxu0 0.0
  %609 = vmatpush1.msra.mxu0 %v61
  %610 = vmatprep.subr.mxu0 0.0
  %611 = vmatpush1.msra.mxu0 %v62
  %612 = vmatprep.subr.mxu0 0.0
  %613 = vmatpush1.msra.mxu0 %v63
  %614 = vmatprep.subr.mxu0 0.0
  %615 = vmatpush1.msra.mxu0 %v64
  %616 = vmatprep.subr.mxu0 0.0
  %617 = vmatpush1.msra.mxu0 %v65
  %618 = vmatprep.subr.mxu0 0.0
  %619 = vmatpush1.msra.mxu0 %v66
  %620 = vmatprep.subr.mxu0 0.0
  %621 = vmatpush1.msra.mxu0 %v67
  %622 = vmatprep.mubr.f32.mxu0 %v448
  %623 = vmatmul.mubr.f32.gmra.mrb[0].mxu0 %v557
  %v624 = vpop.f32.mrb[0].mxu0
  %v625 = vadd.f32 %v72, %v624
  %v626 = vpop.f32.mrb[0].mxu0
  %627 = vdwg.mxu0
  %v628 = vxor.u32 %v625, 2147483648
  %v629 = vmul.f32 %v628, 1.442695
  %v630 = vpow.pop %v629
  %v631 = vadd.f32 %v630, 1.0
  %v632 = vrcp.pop %v631
  %v633 = vmul.f32 1.0, %v632
  %v634 = vtanh.pop %v625
  %v635 = vmul.f32 %v633, %v428
  %637 = vrot.lane.b32.xlu0 %v634, 64
  %v638 = vpop.permute.xlu0 %637
  %v640 = vmul.f32 %v633, %v638
  %642 = vrot.lane.b32.xlu0 %v640, 32
  %v643 = vpop.permute.xlu0 %642
  %v645 = vadd.f32 %v635, %v643
  %v646 = vtanh.pop %v645
  %648 = vrot.lane.b32.xlu0 %v646, 64
  %v649 = vpop.permute.xlu0 %648
  %v651 = vmul.f32 %v633, %v649
  %653 = vrot.lane.b32.xlu0 %v651, 32
  %v654 = vpop.permute.xlu0 %653
  %656 = vrot.lane.b32.xlu0 %v651, 64
  %v657 = vpop.permute.xlu0 %656
  %659 = vrot.lane.b32.xlu0 %v651, 96
  %v660 = vpop.permute.xlu0 %659
  %v662 = vsel %vm100, %v654, %v657
  %v663 = vsel %vm336, %v662, %v660
  %v664 = vsel %vm338, %v663, %v651
  %v665 = vmul.f32 %v664, %v73
  %666 = vmatprep.subr.mxu0 0.0
  %667 = vmatpush1.msra.mxu0 %v20
  %668 = vmatprep.subr.mxu0 0.0
  %669 = vmatpush1.msra.mxu0 %v21
  %670 = vmatprep.subr.mxu0 0.0
  %671 = vmatpush1.msra.mxu0 %v22
  %672 = vmatprep.subr.mxu0 0.0
  %673 = vmatpush1.msra.mxu0 %v23
  %674 = vmatprep.subr.mxu0 0.0
  %675 = vmatpush1.msra.mxu0 %v24
  %676 = vmatprep.subr.mxu0 0.0
  %677 = vmatpush1.msra.mxu0 %v25
  %678 = vmatprep.subr.mxu0 0.0
  %679 = vmatpush1.msra.mxu0 %v26
  %680 = vmatprep.subr.mxu0 0.0
  %681 = vmatpush1.msra.mxu0 %v27
  %682 = vmatprep.subr.mxu0 0.0
  %683 = vmatpush1.msra.mxu0 %v28
  %684 = vmatprep.subr.mxu0 0.0
  %685 = vmatpush1.msra.mxu0 %v29
  %686 = vmatprep.subr.mxu0 0.0
  %687 = vmatpush1.msra.mxu0 %v30
  %688 = vmatprep.subr.mxu0 0.0
  %689 = vmatpush1.msra.mxu0 %v31
  %690 = vmatprep.subr.mxu0 0.0
  %691 = vmatpush1.msra.mxu0 %v32
  %692 = vmatprep.subr.mxu0 0.0
  %693 = vmatpush1.msra.mxu0 %v33
  %694 = vmatprep.subr.mxu0 0.0
  %695 = vmatpush1.msra.mxu0 %v34
  %696 = vmatprep.subr.mxu0 0.0
  %697 = vmatpush1.msra.mxu0 %v35
  %698 = vmatprep.subr.mxu0 0.0
  %699 = vmatpush1.msra.mxu0 0.0
  %700 = vmatprep.subr.mxu0 0.0
  %701 = vmatpush1.msra.mxu0 0.0
  %702 = vmatprep.subr.mxu0 0.0
  %703 = vmatpush1.msra.mxu0 0.0
  %704 = vmatprep.subr.mxu0 0.0
  %705 = vmatpush1.msra.mxu0 0.0
  %706 = vmatprep.subr.mxu0 0.0
  %707 = vmatpush1.msra.mxu0 0.0
  %708 = vmatprep.subr.mxu0 0.0
  %709 = vmatpush1.msra.mxu0 0.0
  %710 = vmatprep.subr.mxu0 0.0
  %711 = vmatpush1.msra.mxu0 0.0
  %712 = vmatprep.subr.mxu0 0.0
  %713 = vmatpush1.msra.mxu0 0.0
  %714 = vmatprep.subr.mxu0 0.0
  %715 = vmatpush1.msra.mxu0 0.0
  %716 = vmatprep.subr.mxu0 0.0
  %717 = vmatpush1.msra.mxu0 0.0
  %718 = vmatprep.subr.mxu0 0.0
  %719 = vmatpush1.msra.mxu0 0.0
  %720 = vmatprep.subr.mxu0 0.0
  %721 = vmatpush1.msra.mxu0 0.0
  %722 = vmatprep.subr.mxu0 0.0
  %723 = vmatpush1.msra.mxu0 0.0
  %724 = vmatprep.subr.mxu0 0.0
  %725 = vmatpush1.msra.mxu0 0.0
  %726 = vmatprep.subr.mxu0 0.0
  %727 = vmatpush1.msra.mxu0 0.0
  %728 = vmatprep.subr.mxu0 0.0
  %729 = vmatpush1.msra.mxu0 0.0
  %730 = vmatprep.mubr.f32.mxu0 0.0
  %731 = vmatmul.mubr.f32.gmra.mrb[0].mxu0 %v557
  %v732 = vpop.f32.mrb[0].mxu0
  %v733 = vadd.f32 0.0, %v732
  %v734 = vpop.f32.mrb[0].mxu0
  %735 = vdwg.mxu0
  %v736 = vadd.f32 %v202, %v733
  %v737 = vxor.u32 %v736, 2147483648
  %v738 = vmul.f32 %v737, 1.442695
  %v739 = vpow.pop %v738
  %v740 = vadd.f32 %v739, 1.0
  %v741 = vrcp.pop %v740
  %v742 = vmul.f32 1.0, %v741
  %v743 = vtanh.pop %v736
  %v744 = vmul.f32 %v742, %v537
  %746 = vrot.lane.b32.xlu0 %v743, 64
  %v747 = vpop.permute.xlu0 %746
  %v749 = vmul.f32 %v742, %v747
  %751 = vrot.lane.b32.xlu0 %v749, 32
  %v752 = vpop.permute.xlu0 %751
  %v754 = vadd.f32 %v744, %v752
  %v755 = vtanh.pop %v754
  %757 = vrot.lane.b32.xlu0 %v755, 64
  %v758 = vpop.permute.xlu0 %757
  %v760 = vmul.f32 %v742, %v758
  %762 = vrot.lane.b32.xlu0 %v760, 32
  %v763 = vpop.permute.xlu0 %762
  %765 = vrot.lane.b32.xlu0 %v760, 64
  %v766 = vpop.permute.xlu0 %765
  %768 = vrot.lane.b32.xlu0 %v760, 96
  %v769 = vpop.permute.xlu0 %768
  %v771 = vsel %vm100, %v763, %v766
  %v772 = vsel %vm336, %v771, %v769
  %v773 = vsel %vm338, %v772, %v760
  %v774 = vmul.f32 %v773, %v73
  %775 = vmatprep.subr.mxu0 0.0
  %776 = vmatpush1.msra.mxu0 %v36
  %777 = vmatprep.subr.mxu0 0.0
  %778 = vmatpush1.msra.mxu0 %v37
  %779 = vmatprep.subr.mxu0 0.0
  %780 = vmatpush1.msra.mxu0 %v38
  %781 = vmatprep.subr.mxu0 0.0
  %782 = vmatpush1.msra.mxu0 %v39
  %783 = vmatprep.subr.mxu0 0.0
  %784 = vmatpush1.msra.mxu0 %v40
  %785 = vmatprep.subr.mxu0 0.0
  %786 = vmatpush1.msra.mxu0 %v41
  %787 = vmatprep.subr.mxu0 0.0
  %788 = vmatpush1.msra.mxu0 %v42
  %789 = vmatprep.subr.mxu0 0.0
  %790 = vmatpush1.msra.mxu0 %v43
  %791 = vmatprep.subr.mxu0 0.0
  %792 = vmatpush1.msra.mxu0 %v44
  %793 = vmatprep.subr.mxu0 0.0
  %794 = vmatpush1.msra.mxu0 %v45
  %795 = vmatprep.subr.mxu0 0.0
  %796 = vmatpush1.msra.mxu0 %v46
  %797 = vmatprep.subr.mxu0 0.0
  %798 = vmatpush1.msra.mxu0 %v47
  %799 = vmatprep.subr.mxu0 0.0
  %800 = vmatpush1.msra.mxu0 %v48
  %801 = vmatprep.subr.mxu0 0.0
  %802 = vmatpush1.msra.mxu0 %v49
  %803 = vmatprep.subr.mxu0 0.0
  %804 = vmatpush1.msra.mxu0 %v50
  %805 = vmatprep.subr.mxu0 0.0
  %806 = vmatpush1.msra.mxu0 %v51
  %807 = vmatprep.subr.mxu0 0.0
  %808 = vmatpush1.msra.mxu0 %v52
  %809 = vmatprep.subr.mxu0 0.0
  %810 = vmatpush1.msra.mxu0 %v53
  %811 = vmatprep.subr.mxu0 0.0
  %812 = vmatpush1.msra.mxu0 %v54
  %813 = vmatprep.subr.mxu0 0.0
  %814 = vmatpush1.msra.mxu0 %v55
  %815 = vmatprep.subr.mxu0 0.0
  %816 = vmatpush1.msra.mxu0 %v56
  %817 = vmatprep.subr.mxu0 0.0
  %818 = vmatpush1.msra.mxu0 %v57
  %819 = vmatprep.subr.mxu0 0.0
  %820 = vmatpush1.msra.mxu0 %v58
  %821 = vmatprep.subr.mxu0 0.0
  %822 = vmatpush1.msra.mxu0 %v59
  %823 = vmatprep.subr.mxu0 0.0
  %824 = vmatpush1.msra.mxu0 %v60
  %825 = vmatprep.subr.mxu0 0.0
  %826 = vmatpush1.msra.mxu0 %v61
  %827 = vmatprep.subr.mxu0 0.0
  %828 = vmatpush1.msra.mxu0 %v62
  %829 = vmatprep.subr.mxu0 0.0
  %830 = vmatpush1.msra.mxu0 %v63
  %831 = vmatprep.subr.mxu0 0.0
  %832 = vmatpush1.msra.mxu0 %v64
  %833 = vmatprep.subr.mxu0 0.0
  %834 = vmatpush1.msra.mxu0 %v65
  %835 = vmatprep.subr.mxu0 0.0
  %836 = vmatpush1.msra.mxu0 %v66
  %837 = vmatprep.subr.mxu0 0.0
  %838 = vmatpush1.msra.mxu0 %v67
  %839 = vmatprep.mubr.f32.mxu0 %v665
  %840 = vmatmul.mubr.f32.gmra.mrb[0].mxu0 %v774
  %v841 = vpop.f32.mrb[0].mxu0
  %v842 = vadd.f32 %v72, %v841
  %v843 = vpop.f32.mrb[0].mxu0
  %844 = vdwg.mxu0
  %v845 = vxor.u32 %v842, 2147483648
  %v846 = vmul.f32 %v845, 1.442695
  %v847 = vpow.pop %v846
  %v848 = vadd.f32 %v847, 1.0
  %v849 = vrcp.pop %v848
  %v850 = vmul.f32 1.0, %v849
  %v851 = vtanh.pop %v842
  %v852 = vmul.f32 %v850, %v645
  %854 = vrot.lane.b32.xlu0 %v851, 64
  %v855 = vpop.permute.xlu0 %854
  %v857 = vmul.f32 %v850, %v855
  %859 = vrot.lane.b32.xlu0 %v857, 32
  %v860 = vpop.permute.xlu0 %859
  %v862 = vadd.f32 %v852, %v860
  %v863 = vtanh.pop %v862
  %865 = vrot.lane.b32.xlu0 %v863, 64
  %v866 = vpop.permute.xlu0 %865
  %v868 = vmul.f32 %v850, %v866
  %870 = vrot.lane.b32.xlu0 %v868, 32
  %v871 = vpop.permute.xlu0 %870
  %873 = vrot.lane.b32.xlu0 %v868, 64
  %v874 = vpop.permute.xlu0 %873
  %876 = vrot.lane.b32.xlu0 %v868, 96
  %v877 = vpop.permute.xlu0 %876
  %v879 = vsel %vm100, %v871, %v874
  %v880 = vsel %vm336, %v879, %v877
  %v881 = vsel %vm338, %v880, %v868
  %v882 = vmul.f32 %v881, %v73
  %883 = vmatprep.subr.mxu0 0.0
  %884 = vmatpush1.msra.mxu0 %v20
  %885 = vmatprep.subr.mxu0 0.0
  %886 = vmatpush1.msra.mxu0 %v21
  %887 = vmatprep.subr.mxu0 0.0
  %888 = vmatpush1.msra.mxu0 %v22
  %889 = vmatprep.subr.mxu0 0.0
  %890 = vmatpush1.msra.mxu0 %v23
  %891 = vmatprep.subr.mxu0 0.0
  %892 = vmatpush1.msra.mxu0 %v24
  %893 = vmatprep.subr.mxu0 0.0
  %894 = vmatpush1.msra.mxu0 %v25
  %895 = vmatprep.subr.mxu0 0.0
  %896 = vmatpush1.msra.mxu0 %v26
  %897 = vmatprep.subr.mxu0 0.0
  %898 = vmatpush1.msra.mxu0 %v27
  %899 = vmatprep.subr.mxu0 0.0
  %900 = vmatpush1.msra.mxu0 %v28
  %901 = vmatprep.subr.mxu0 0.0
  %902 = vmatpush1.msra.mxu0 %v29
  %903 = vmatprep.subr.mxu0 0.0
  %904 = vmatpush1.msra.mxu0 %v30
  %905 = vmatprep.subr.mxu0 0.0
  %906 = vmatpush1.msra.mxu0 %v31
  %907 = vmatprep.subr.mxu0 0.0
  %908 = vmatpush1.msra.mxu0 %v32
  %909 = vmatprep.subr.mxu0 0.0
  %910 = vmatpush1.msra.mxu0 %v33
  %911 = vmatprep.subr.mxu0 0.0
  %912 = vmatpush1.msra.mxu0 %v34
  %913 = vmatprep.subr.mxu0 0.0
  %914 = vmatpush1.msra.mxu0 %v35
  %915 = vmatprep.subr.mxu0 0.0
  %916 = vmatpush1.msra.mxu0 0.0
  %917 = vmatprep.subr.mxu0 0.0
  %918 = vmatpush1.msra.mxu0 0.0
  %919 = vmatprep.subr.mxu0 0.0
  %920 = vmatpush1.msra.mxu0 0.0
  %921 = vmatprep.subr.mxu0 0.0
  %922 = vmatpush1.msra.mxu0 0.0
  %923 = vmatprep.subr.mxu0 0.0
  %924 = vmatpush1.msra.mxu0 0.0
  %925 = vmatprep.subr.mxu0 0.0
  %926 = vmatpush1.msra.mxu0 0.0
  %927 = vmatprep.subr.mxu0 0.0
  %928 = vmatpush1.msra.mxu0 0.0
  %929 = vmatprep.subr.mxu0 0.0
  %930 = vmatpush1.msra.mxu0 0.0
  %931 = vmatprep.subr.mxu0 0.0
  %932 = vmatpush1.msra.mxu0 0.0
  %933 = vmatprep.subr.mxu0 0.0
  %934 = vmatpush1.msra.mxu0 0.0
  %935 = vmatprep.subr.mxu0 0.0
  %936 = vmatpush1.msra.mxu0 0.0
  %937 = vmatprep.subr.mxu0 0.0
  %938 = vmatpush1.msra.mxu0 0.0
  %939 = vmatprep.subr.mxu0 0.0
  %940 = vmatpush1.msra.mxu0 0.0
  %941 = vmatprep.subr.mxu0 0.0
  %942 = vmatpush1.msra.mxu0 0.0
  %943 = vmatprep.subr.mxu0 0.0
  %944 = vmatpush1.msra.mxu0 0.0
  %945 = vmatprep.subr.mxu0 0.0
  %946 = vmatpush1.msra.mxu0 0.0
  %947 = vmatprep.mubr.f32.mxu0 0.0
  %948 = vmatmul.mubr.f32.gmra.mrb[0].mxu0 %v774
  %v949 = vpop.f32.mrb[0].mxu0
  %v950 = vadd.f32 0.0, %v949
  %v951 = vpop.f32.mrb[0].mxu0
  %952 = vdwg.mxu0
  %v953 = vadd.f32 %v207, %v950
  %v954 = vxor.u32 %v953, 2147483648
  %v955 = vmul.f32 %v954, 1.442695
  %v956 = vpow.pop %v955
  %v957 = vadd.f32 %v956, 1.0
  %v958 = vrcp.pop %v957
  %v959 = vmul.f32 1.0, %v958
  %v960 = vtanh.pop %v953
  %v961 = vmul.f32 %v959, %v754
  %963 = vrot.lane.b32.xlu0 %v960, 64
  %v964 = vpop.permute.xlu0 %963
  %v966 = vmul.f32 %v959, %v964
  %968 = vrot.lane.b32.xlu0 %v966, 32
  %v969 = vpop.permute.xlu0 %968
  %v971 = vadd.f32 %v961, %v969
  %v972 = vtanh.pop %v971
  %974 = vrot.lane.b32.xlu0 %v972, 64
  %v975 = vpop.permute.xlu0 %974
  %v977 = vmul.f32 %v959, %v975
  %979 = vrot.lane.b32.xlu0 %v977, 32
  %v980 = vpop.permute.xlu0 %979
  %982 = vrot.lane.b32.xlu0 %v977, 64
  %v983 = vpop.permute.xlu0 %982
  %985 = vrot.lane.b32.xlu0 %v977, 96
  %v986 = vpop.permute.xlu0 %985
  %v988 = vsel %vm100, %v980, %v983
  %v989 = vsel %vm336, %v988, %v986
  %v990 = vsel %vm338, %v989, %v977
  %v991 = vmul.f32 %v990, %v73
  %992 = vmatprep.subr.mxu0 0.0
  %993 = vmatpush1.msra.mxu0 %v36
  %994 = vmatprep.subr.mxu0 0.0
  %995 = vmatpush1.msra.mxu0 %v37
  %996 = vmatprep.subr.mxu0 0.0
  %997 = vmatpush1.msra.mxu0 %v38
  %998 = vmatprep.subr.mxu0 0.0
  %999 = vmatpush1.msra.mxu0 %v39
  %1000 = vmatprep.subr.mxu0 0.0
  %1001 = vmatpush1.msra.mxu0 %v40
  %1002 = vmatprep.subr.mxu0 0.0
  %1003 = vmatpush1.msra.mxu0 %v41
  %1004 = vmatprep.subr.mxu0 0.0
  %1005 = vmatpush1.msra.mxu0 %v42
  %1006 = vmatprep.subr.mxu0 0.0
  %1007 = vmatpush1.msra.mxu0 %v43
  %1008 = vmatprep.subr.mxu0 0.0
  %1009 = vmatpush1.msra.mxu0 %v44
  %1010 = vmatprep.subr.mxu0 0.0
  %1011 = vmatpush1.msra.mxu0 %v45
  %1012 = vmatprep.subr.mxu0 0.0
  %1013 = vmatpush1.msra.mxu0 %v46
  %1014 = vmatprep.subr.mxu0 0.0
  %1015 = vmatpush1.msra.mxu0 %v47
  %1016 = vmatprep.subr.mxu0 0.0
  %1017 = vmatpush1.msra.mxu0 %v48
  %1018 = vmatprep.subr.mxu0 0.0
  %1019 = vmatpush1.msra.mxu0 %v49
  %1020 = vmatprep.subr.mxu0 0.0
  %1021 = vmatpush1.msra.mxu0 %v50
  %1022 = vmatprep.subr.mxu0 0.0
  %1023 = vmatpush1.msra.mxu0 %v51
  %1024 = vmatprep.subr.mxu0 0.0
  %1025 = vmatpush1.msra.mxu0 %v52
  %1026 = vmatprep.subr.mxu0 0.0
  %1027 = vmatpush1.msra.mxu0 %v53
  %1028 = vmatprep.subr.mxu0 0.0
  %1029 = vmatpush1.msra.mxu0 %v54
  %1030 = vmatprep.subr.mxu0 0.0
  %1031 = vmatpush1.msra.mxu0 %v55
  %1032 = vmatprep.subr.mxu0 0.0
  %1033 = vmatpush1.msra.mxu0 %v56
  %1034 = vmatprep.subr.mxu0 0.0
  %1035 = vmatpush1.msra.mxu0 %v57
  %1036 = vmatprep.subr.mxu0 0.0
  %1037 = vmatpush1.msra.mxu0 %v58
  %1038 = vmatprep.subr.mxu0 0.0
  %1039 = vmatpush1.msra.mxu0 %v59
  %1040 = vmatprep.subr.mxu0 0.0
  %1041 = vmatpush1.msra.mxu0 %v60
  %1042 = vmatprep.subr.mxu0 0.0
  %1043 = vmatpush1.msra.mxu0 %v61
  %1044 = vmatprep.subr.mxu0 0.0
  %1045 = vmatpush1.msra.mxu0 %v62
  %1046 = vmatprep.subr.mxu0 0.0
  %1047 = vmatpush1.msra.mxu0 %v63
  %1048 = vmatprep.subr.mxu0 0.0
  %1049 = vmatpush1.msra.mxu0 %v64
  %1050 = vmatprep.subr.mxu0 0.0
  %1051 = vmatpush1.msra.mxu0 %v65
  %1052 = vmatprep.subr.mxu0 0.0
  %1053 = vmatpush1.msra.mxu0 %v66
  %1054 = vmatprep.subr.mxu0 0.0
  %1055 = vmatpush1.msra.mxu0 %v67
  %1056 = vmatprep.mubr.f32.mxu0 %v882
  %1057 = vmatmul.mubr.f32.gmra.mrb[0].mxu0 %v991
  %v1058 = vpop.f32.mrb[0].mxu0
  %v1059 = vadd.f32 %v72, %v1058
  %v1060 = vpop.f32.mrb[0].mxu0
  %1061 = vdwg.mxu0
  %v1062 = vxor.u32 %v1059, 2147483648
  %v1063 = vmul.f32 %v1062, 1.442695
  %v1064 = vpow.pop %v1063
  %v1065 = vadd.f32 %v1064, 1.0
  %v1066 = vrcp.pop %v1065
  %v1067 = vmul.f32 1.0, %v1066
  %v1068 = vtanh.pop %v1059
  %v1069 = vmul.f32 %v1067, %v862
  %1071 = vrot.lane.b32.xlu0 %v1068, 64
  %v1072 = vpop.permute.xlu0 %1071
  %v1074 = vmul.f32 %v1067, %v1072
  %1076 = vrot.lane.b32.xlu0 %v1074, 32
  %v1077 = vpop.permute.xlu0 %1076
  %v1079 = vadd.f32 %v1069, %v1077
  %v1080 = vtanh.pop %v1079
  %1082 = vrot.lane.b32.xlu0 %v1080, 64
  %v1083 = vpop.permute.xlu0 %1082
  %v1085 = vmul.f32 %v1067, %v1083
  %1087 = vrot.lane.b32.xlu0 %v1085, 32
  %v1088 = vpop.permute.xlu0 %1087
  %1090 = vrot.lane.b32.xlu0 %v1085, 64
  %v1091 = vpop.permute.xlu0 %1090
  %1093 = vrot.lane.b32.xlu0 %v1085, 96
  %v1094 = vpop.permute.xlu0 %1093
  %v1096 = vsel %vm100, %v1088, %v1091
  %v1097 = vsel %vm336, %v1096, %v1094
  %v1098 = vsel %vm338, %v1097, %v1085
  %v1099 = vmul.f32 %v1098, %v73
  %1100 = vmatprep.subr.mxu0 0.0
  %1101 = vmatpush1.msra.mxu0 %v20
  %1102 = vmatprep.subr.mxu0 0.0
  %1103 = vmatpush1.msra.mxu0 %v21
  %1104 = vmatprep.subr.mxu0 0.0
  %1105 = vmatpush1.msra.mxu0 %v22
  %1106 = vmatprep.subr.mxu0 0.0
  %1107 = vmatpush1.msra.mxu0 %v23
  %1108 = vmatprep.subr.mxu0 0.0
  %1109 = vmatpush1.msra.mxu0 %v24
  %1110 = vmatprep.subr.mxu0 0.0
  %1111 = vmatpush1.msra.mxu0 %v25
  %1112 = vmatprep.subr.mxu0 0.0
  %1113 = vmatpush1.msra.mxu0 %v26
  %1114 = vmatprep.subr.mxu0 0.0
  %1115 = vmatpush1.msra.mxu0 %v27
  %1116 = vmatprep.subr.mxu0 0.0
  %1117 = vmatpush1.msra.mxu0 %v28
  %1118 = vmatprep.subr.mxu0 0.0
  %1119 = vmatpush1.msra.mxu0 %v29
  %1120 = vmatprep.subr.mxu0 0.0
  %1121 = vmatpush1.msra.mxu0 %v30
  %1122 = vmatprep.subr.mxu0 0.0
  %1123 = vmatpush1.msra.mxu0 %v31
  %1124 = vmatprep.subr.mxu0 0.0
  %1125 = vmatpush1.msra.mxu0 %v32
  %1126 = vmatprep.subr.mxu0 0.0
  %1127 = vmatpush1.msra.mxu0 %v33
  %1128 = vmatprep.subr.mxu0 0.0
  %1129 = vmatpush1.msra.mxu0 %v34
  %1130 = vmatprep.subr.mxu0 0.0
  %1131 = vmatpush1.msra.mxu0 %v35
  %1132 = vmatprep.subr.mxu0 0.0
  %1133 = vmatpush1.msra.mxu0 0.0
  %1134 = vmatprep.subr.mxu0 0.0
  %1135 = vmatpush1.msra.mxu0 0.0
  %1136 = vmatprep.subr.mxu0 0.0
  %1137 = vmatpush1.msra.mxu0 0.0
  %1138 = vmatprep.subr.mxu0 0.0
  %1139 = vmatpush1.msra.mxu0 0.0
  %1140 = vmatprep.subr.mxu0 0.0
  %1141 = vmatpush1.msra.mxu0 0.0
  %1142 = vmatprep.subr.mxu0 0.0
  %1143 = vmatpush1.msra.mxu0 0.0
  %1144 = vmatprep.subr.mxu0 0.0
  %1145 = vmatpush1.msra.mxu0 0.0
  %1146 = vmatprep.subr.mxu0 0.0
  %1147 = vmatpush1.msra.mxu0 0.0
  %1148 = vmatprep.subr.mxu0 0.0
  %1149 = vmatpush1.msra.mxu0 0.0
  %1150 = vmatprep.subr.mxu0 0.0
  %1151 = vmatpush1.msra.mxu0 0.0
  %1152 = vmatprep.subr.mxu0 0.0
  %1153 = vmatpush1.msra.mxu0 0.0
  %1154 = vmatprep.subr.mxu0 0.0
  %1155 = vmatpush1.msra.mxu0 0.0
  %1156 = vmatprep.subr.mxu0 0.0
  %1157 = vmatpush1.msra.mxu0 0.0
  %1158 = vmatprep.subr.mxu0 0.0
  %1159 = vmatpush1.msra.mxu0 0.0
  %1160 = vmatprep.subr.mxu0 0.0
  %1161 = vmatpush1.msra.mxu0 0.0
  %1162 = vmatprep.subr.mxu0 0.0
  %1163 = vmatpush1.msra.mxu0 0.0
  %1164 = vmatprep.mubr.f32.mxu0 0.0
  %1165 = vmatmul.mubr.f32.gmra.mrb[0].mxu0 %v991
  %v1166 = vpop.f32.mrb[0].mxu0
  %v1167 = vadd.f32 0.0, %v1166
  %v1168 = vpop.f32.mrb[0].mxu0
  %1169 = vdwg.mxu0
  %v1170 = vadd.f32 %v212, %v1167
  %v1171 = vxor.u32 %v1170, 2147483648
  %v1172 = vmul.f32 %v1171, 1.442695
  %v1173 = vpow.pop %v1172
  %v1174 = vadd.f32 %v1173, 1.0
  %v1175 = vrcp.pop %v1174
  %v1176 = vmul.f32 1.0, %v1175
  %v1177 = vtanh.pop %v1170
  %v1178 = vmul.f32 %v1176, %v971
  %1180 = vrot.lane.b32.xlu0 %v1177, 64
  %v1181 = vpop.permute.xlu0 %1180
  %v1183 = vmul.f32 %v1176, %v1181
  %1185 = vrot.lane.b32.xlu0 %v1183, 32
  %v1186 = vpop.permute.xlu0 %1185
  %v1188 = vadd.f32 %v1178, %v1186
  %v1189 = vtanh.pop %v1188
  %1191 = vrot.lane.b32.xlu0 %v1189, 64
  %v1192 = vpop.permute.xlu0 %1191
  %v1194 = vmul.f32 %v1176, %v1192
  %1196 = vrot.lane.b32.xlu0 %v1194, 32
  %v1197 = vpop.permute.xlu0 %1196
  %1199 = vrot.lane.b32.xlu0 %v1194, 64
  %v1200 = vpop.permute.xlu0 %1199
  %1202 = vrot.lane.b32.xlu0 %v1194, 96
  %v1203 = vpop.permute.xlu0 %1202
  %v1205 = vsel %vm100, %v1197, %v1200
  %v1206 = vsel %vm336, %v1205, %v1203
  %v1207 = vsel %vm338, %v1206, %v1194
  %v1208 = vmul.f32 %v1207, %v73
  %1209 = vmatprep.subr.mxu0 0.0
  %1210 = vmatpush1.msra.mxu0 %v36
  %1211 = vmatprep.subr.mxu0 0.0
  %1212 = vmatpush1.msra.mxu0 %v37
  %1213 = vmatprep.subr.mxu0 0.0
  %1214 = vmatpush1.msra.mxu0 %v38
  %1215 = vmatprep.subr.mxu0 0.0
  %1216 = vmatpush1.msra.mxu0 %v39
  %1217 = vmatprep.subr.mxu0 0.0
  %1218 = vmatpush1.msra.mxu0 %v40
  %1219 = vmatprep.subr.mxu0 0.0
  %1220 = vmatpush1.msra.mxu0 %v41
  %1221 = vmatprep.subr.mxu0 0.0
  %1222 = vmatpush1.msra.mxu0 %v42
  %1223 = vmatprep.subr.mxu0 0.0
  %1224 = vmatpush1.msra.mxu0 %v43
  %1225 = vmatprep.subr.mxu0 0.0
  %1226 = vmatpush1.msra.mxu0 %v44
  %1227 = vmatprep.subr.mxu0 0.0
  %1228 = vmatpush1.msra.mxu0 %v45
  %1229 = vmatprep.subr.mxu0 0.0
  %1230 = vmatpush1.msra.mxu0 %v46
  %1231 = vmatprep.subr.mxu0 0.0
  %1232 = vmatpush1.msra.mxu0 %v47
  %1233 = vmatprep.subr.mxu0 0.0
  %1234 = vmatpush1.msra.mxu0 %v48
  %1235 = vmatprep.subr.mxu0 0.0
  %1236 = vmatpush1.msra.mxu0 %v49
  %1237 = vmatprep.subr.mxu0 0.0
  %1238 = vmatpush1.msra.mxu0 %v50
  %1239 = vmatprep.subr.mxu0 0.0
  %1240 = vmatpush1.msra.mxu0 %v51
  %1241 = vmatprep.subr.mxu0 0.0
  %1242 = vmatpush1.msra.mxu0 %v52
  %1243 = vmatprep.subr.mxu0 0.0
  %1244 = vmatpush1.msra.mxu0 %v53
  %1245 = vmatprep.subr.mxu0 0.0
  %1246 = vmatpush1.msra.mxu0 %v54
  %1247 = vmatprep.subr.mxu0 0.0
  %1248 = vmatpush1.msra.mxu0 %v55
  %1249 = vmatprep.subr.mxu0 0.0
  %1250 = vmatpush1.msra.mxu0 %v56
  %1251 = vmatprep.subr.mxu0 0.0
  %1252 = vmatpush1.msra.mxu0 %v57
  %1253 = vmatprep.subr.mxu0 0.0
  %1254 = vmatpush1.msra.mxu0 %v58
  %1255 = vmatprep.subr.mxu0 0.0
  %1256 = vmatpush1.msra.mxu0 %v59
  %1257 = vmatprep.subr.mxu0 0.0
  %1258 = vmatpush1.msra.mxu0 %v60
  %1259 = vmatprep.subr.mxu0 0.0
  %1260 = vmatpush1.msra.mxu0 %v61
  %1261 = vmatprep.subr.mxu0 0.0
  %1262 = vmatpush1.msra.mxu0 %v62
  %1263 = vmatprep.subr.mxu0 0.0
  %1264 = vmatpush1.msra.mxu0 %v63
  %1265 = vmatprep.subr.mxu0 0.0
  %1266 = vmatpush1.msra.mxu0 %v64
  %1267 = vmatprep.subr.mxu0 0.0
  %1268 = vmatpush1.msra.mxu0 %v65
  %1269 = vmatprep.subr.mxu0 0.0
  %1270 = vmatpush1.msra.mxu0 %v66
  %1271 = vmatprep.subr.mxu0 0.0
  %1272 = vmatpush1.msra.mxu0 %v67
  %1273 = vmatprep.mubr.f32.mxu0 %v1099
  %1274 = vmatmul.mubr.f32.gmra.mrb[0].mxu0 %v1208
  %v1275 = vpop.f32.mrb[0].mxu0
  %v1276 = vadd.f32 %v72, %v1275
  %v1277 = vpop.f32.mrb[0].mxu0
  %1278 = vdwg.mxu0
  %v1279 = vxor.u32 %v1276, 2147483648
  %v1280 = vmul.f32 %v1279, 1.442695
  %v1281 = vpow.pop %v1280
  %v1282 = vadd.f32 %v1281, 1.0
  %v1283 = vrcp.pop %v1282
  %v1284 = vmul.f32 1.0, %v1283
  %v1285 = vtanh.pop %v1276
  %v1286 = vmul.f32 %v1284, %v1079
  %1288 = vrot.lane.b32.xlu0 %v1285, 64
  %v1289 = vpop.permute.xlu0 %1288
  %v1291 = vmul.f32 %v1284, %v1289
  %1293 = vrot.lane.b32.xlu0 %v1291, 32
  %v1294 = vpop.permute.xlu0 %1293
  %v1296 = vadd.f32 %v1286, %v1294
  %v1297 = vtanh.pop %v1296
  %1299 = vrot.lane.b32.xlu0 %v1297, 64
  %v1300 = vpop.permute.xlu0 %1299
  %v1302 = vmul.f32 %v1284, %v1300
  %1304 = vrot.lane.b32.xlu0 %v1302, 32
  %v1305 = vpop.permute.xlu0 %1304
  %1307 = vrot.lane.b32.xlu0 %v1302, 64
  %v1308 = vpop.permute.xlu0 %1307
  %1310 = vrot.lane.b32.xlu0 %v1302, 96
  %v1311 = vpop.permute.xlu0 %1310
  %v1313 = vsel %vm100, %v1305, %v1308
  %v1314 = vsel %vm336, %v1313, %v1311
  %v1315 = vsel %vm338, %v1314, %v1302
  %v1316 = vmul.f32 %v1315, %v73
  %1317 = vmatprep.subr.mxu0 0.0
  %1318 = vmatpush1.msra.mxu0 %v20
  %1319 = vmatprep.subr.mxu0 0.0
  %1320 = vmatpush1.msra.mxu0 %v21
  %1321 = vmatprep.subr.mxu0 0.0
  %1322 = vmatpush1.msra.mxu0 %v22
  %1323 = vmatprep.subr.mxu0 0.0
  %1324 = vmatpush1.msra.mxu0 %v23
  %1325 = vmatprep.subr.mxu0 0.0
  %1326 = vmatpush1.msra.mxu0 %v24
  %1327 = vmatprep.subr.mxu0 0.0
  %1328 = vmatpush1.msra.mxu0 %v25
  %1329 = vmatprep.subr.mxu0 0.0
  %1330 = vmatpush1.msra.mxu0 %v26
  %1331 = vmatprep.subr.mxu0 0.0
  %1332 = vmatpush1.msra.mxu0 %v27
  %1333 = vmatprep.subr.mxu0 0.0
  %1334 = vmatpush1.msra.mxu0 %v28
  %1335 = vmatprep.subr.mxu0 0.0
  %1336 = vmatpush1.msra.mxu0 %v29
  %1337 = vmatprep.subr.mxu0 0.0
  %1338 = vmatpush1.msra.mxu0 %v30
  %1339 = vmatprep.subr.mxu0 0.0
  %1340 = vmatpush1.msra.mxu0 %v31
  %1341 = vmatprep.subr.mxu0 0.0
  %1342 = vmatpush1.msra.mxu0 %v32
  %1343 = vmatprep.subr.mxu0 0.0
  %1344 = vmatpush1.msra.mxu0 %v33
  %1345 = vmatprep.subr.mxu0 0.0
  %1346 = vmatpush1.msra.mxu0 %v34
  %1347 = vmatprep.subr.mxu0 0.0
  %1348 = vmatpush1.msra.mxu0 %v35
  %1349 = vmatprep.subr.mxu0 0.0
  %1350 = vmatpush1.msra.mxu0 0.0
  %1351 = vmatprep.subr.mxu0 0.0
  %1352 = vmatpush1.msra.mxu0 0.0
  %1353 = vmatprep.subr.mxu0 0.0
  %1354 = vmatpush1.msra.mxu0 0.0
  %1355 = vmatprep.subr.mxu0 0.0
  %1356 = vmatpush1.msra.mxu0 0.0
  %1357 = vmatprep.subr.mxu0 0.0
  %1358 = vmatpush1.msra.mxu0 0.0
  %1359 = vmatprep.subr.mxu0 0.0
  %1360 = vmatpush1.msra.mxu0 0.0
  %1361 = vmatprep.subr.mxu0 0.0
  %1362 = vmatpush1.msra.mxu0 0.0
  %1363 = vmatprep.subr.mxu0 0.0
  %1364 = vmatpush1.msra.mxu0 0.0
  %1365 = vmatprep.subr.mxu0 0.0
  %1366 = vmatpush1.msra.mxu0 0.0
  %1367 = vmatprep.subr.mxu0 0.0
  %1368 = vmatpush1.msra.mxu0 0.0
  %1369 = vmatprep.subr.mxu0 0.0
  %1370 = vmatpush1.msra.mxu0 0.0
  %1371 = vmatprep.subr.mxu0 0.0
  %1372 = vmatpush1.msra.mxu0 0.0
  %1373 = vmatprep.subr.mxu0 0.0
  %1374 = vmatpush1.msra.mxu0 0.0
  %1375 = vmatprep.subr.mxu0 0.0
  %1376 = vmatpush1.msra.mxu0 0.0
  %1377 = vmatprep.subr.mxu0 0.0
  %1378 = vmatpush1.msra.mxu0 0.0
  %1379 = vmatprep.subr.mxu0 0.0
  %1380 = vmatpush1.msra.mxu0 0.0
  %1381 = vmatprep.mubr.f32.mxu0 0.0
  %1382 = vmatmul.mubr.f32.gmra.mrb[0].mxu0 %v1208
  %v1383 = vpop.f32.mrb[0].mxu0
  %v1384 = vadd.f32 0.0, %v1383
  %v1385 = vpop.f32.mrb[0].mxu0
  %1386 = vdwg.mxu0
  %v1387 = vadd.f32 %v217, %v1384
  %v1388 = vxor.u32 %v1387, 2147483648
  %v1389 = vmul.f32 %v1388, 1.442695
  %v1390 = vpow.pop %v1389
  %v1391 = vadd.f32 %v1390, 1.0
  %v1392 = vrcp.pop %v1391
  %v1393 = vmul.f32 1.0, %v1392
  %v1394 = vtanh.pop %v1387
  %v1395 = vmul.f32 %v1393, %v1188
  %1397 = vrot.lane.b32.xlu0 %v1394, 64
  %v1398 = vpop.permute.xlu0 %1397
  %v1400 = vmul.f32 %v1393, %v1398
  %1402 = vrot.lane.b32.xlu0 %v1400, 32
  %v1403 = vpop.permute.xlu0 %1402
  %v1405 = vadd.f32 %v1395, %v1403
  %v1406 = vtanh.pop %v1405
  %1408 = vrot.lane.b32.xlu0 %v1406, 64
  %v1409 = vpop.permute.xlu0 %1408
  %v1411 = vmul.f32 %v1393, %v1409
  %1413 = vrot.lane.b32.xlu0 %v1411, 32
  %v1414 = vpop.permute.xlu0 %1413
  %1416 = vrot.lane.b32.xlu0 %v1411, 64
  %v1417 = vpop.permute.xlu0 %1416
  %1419 = vrot.lane.b32.xlu0 %v1411, 96
  %v1420 = vpop.permute.xlu0 %1419
  %v1422 = vsel %vm100, %v1414, %v1417
  %v1423 = vsel %vm336, %v1422, %v1420
  %v1424 = vsel %vm338, %v1423, %v1411
  %v1425 = vmul.f32 %v1424, %v73
  %1426 = vmatprep.subr.mxu0 0.0
  %1427 = vmatpush1.msra.mxu0 %v36
  %1428 = vmatprep.subr.mxu0 0.0
  %1429 = vmatpush1.msra.mxu0 %v37
  %1430 = vmatprep.subr.mxu0 0.0
  %1431 = vmatpush1.msra.mxu0 %v38
  %1432 = vmatprep.subr.mxu0 0.0
  %1433 = vmatpush1.msra.mxu0 %v39
  %1434 = vmatprep.subr.mxu0 0.0
  %1435 = vmatpush1.msra.mxu0 %v40
  %1436 = vmatprep.subr.mxu0 0.0
  %1437 = vmatpush1.msra.mxu0 %v41
  %1438 = vmatprep.subr.mxu0 0.0
  %1439 = vmatpush1.msra.mxu0 %v42
  %1440 = vmatprep.subr.mxu0 0.0
  %1441 = vmatpush1.msra.mxu0 %v43
  %1442 = vmatprep.subr.mxu0 0.0
  %1443 = vmatpush1.msra.mxu0 %v44
  %1444 = vmatprep.subr.mxu0 0.0
  %1445 = vmatpush1.msra.mxu0 %v45
  %1446 = vmatprep.subr.mxu0 0.0
  %1447 = vmatpush1.msra.mxu0 %v46
  %1448 = vmatprep.subr.mxu0 0.0
  %1449 = vmatpush1.msra.mxu0 %v47
  %1450 = vmatprep.subr.mxu0 0.0
  %1451 = vmatpush1.msra.mxu0 %v48
  %1452 = vmatprep.subr.mxu0 0.0
  %1453 = vmatpush1.msra.mxu0 %v49
  %1454 = vmatprep.subr.mxu0 0.0
  %1455 = vmatpush1.msra.mxu0 %v50
  %1456 = vmatprep.subr.mxu0 0.0
  %1457 = vmatpush1.msra.mxu0 %v51
  %1458 = vmatprep.subr.mxu0 0.0
  %1459 = vmatpush1.msra.mxu0 %v52
  %1460 = vmatprep.subr.mxu0 0.0
  %1461 = vmatpush1.msra.mxu0 %v53
  %1462 = vmatprep.subr.mxu0 0.0
  %1463 = vmatpush1.msra.mxu0 %v54
  %1464 = vmatprep.subr.mxu0 0.0
  %1465 = vmatpush1.msra.mxu0 %v55
  %1466 = vmatprep.subr.mxu0 0.0
  %1467 = vmatpush1.msra.mxu0 %v56
  %1468 = vmatprep.subr.mxu0 0.0
  %1469 = vmatpush1.msra.mxu0 %v57
  %1470 = vmatprep.subr.mxu0 0.0
  %1471 = vmatpush1.msra.mxu0 %v58
  %1472 = vmatprep.subr.mxu0 0.0
  %1473 = vmatpush1.msra.mxu0 %v59
  %1474 = vmatprep.subr.mxu0 0.0
  %1475 = vmatpush1.msra.mxu0 %v60
  %1476 = vmatprep.subr.mxu0 0.0
  %1477 = vmatpush1.msra.mxu0 %v61
  %1478 = vmatprep.subr.mxu0 0.0
  %1479 = vmatpush1.msra.mxu0 %v62
  %1480 = vmatprep.subr.mxu0 0.0
  %1481 = vmatpush1.msra.mxu0 %v63
  %1482 = vmatprep.subr.mxu0 0.0
  %1483 = vmatpush1.msra.mxu0 %v64
  %1484 = vmatprep.subr.mxu0 0.0
  %1485 = vmatpush1.msra.mxu0 %v65
  %1486 = vmatprep.subr.mxu0 0.0
  %1487 = vmatpush1.msra.mxu0 %v66
  %1488 = vmatprep.subr.mxu0 0.0
  %1489 = vmatpush1.msra.mxu0 %v67
  %1490 = vmatprep.mubr.f32.mxu0 %v1316
  %1491 = vmatmul.mubr.f32.gmra.mrb[0].mxu0 %v1425
  %v1492 = vpop.f32.mrb[0].mxu0
  %v1493 = vadd.f32 %v72, %v1492
  %v1494 = vpop.f32.mrb[0].mxu0
  %1495 = vdwg.mxu0
  %v1496 = vxor.u32 %v1493, 2147483648
  %v1497 = vmul.f32 %v1496, 1.442695
  %v1498 = vpow.pop %v1497
  %v1499 = vadd.f32 %v1498, 1.0
  %v1500 = vrcp.pop %v1499
  %v1501 = vmul.f32 1.0, %v1500
  %v1502 = vtanh.pop %v1493
  %v1503 = vmul.f32 %v1501, %v1296
  %1505 = vrot.lane.b32.xlu0 %v1502, 64
  %v1506 = vpop.permute.xlu0 %1505
  %v1508 = vmul.f32 %v1501, %v1506
  %1510 = vrot.lane.b32.xlu0 %v1508, 32
  %v1511 = vpop.permute.xlu0 %1510
  %v1513 = vadd.f32 %v1503, %v1511
  %v1514 = vtanh.pop %v1513
  %1516 = vrot.lane.b32.xlu0 %v1514, 64
  %v1517 = vpop.permute.xlu0 %1516
  %v1519 = vmul.f32 %v1501, %v1517
  %1521 = vrot.lane.b32.xlu0 %v1519, 32
  %v1522 = vpop.permute.xlu0 %1521
  %1524 = vrot.lane.b32.xlu0 %v1519, 64
  %v1525 = vpop.permute.xlu0 %1524
  %1527 = vrot.lane.b32.xlu0 %v1519, 96
  %v1528 = vpop.permute.xlu0 %1527
  %v1530 = vsel %vm100, %v1522, %v1525
  %v1531 = vsel %vm336, %v1530, %v1528
  %v1532 = vsel %vm338, %v1531, %v1519
  %v1533 = vmul.f32 %v1532, %v73
  %1534 = vmatprep.subr.mxu0 0.0
  %1535 = vmatpush1.msra.mxu0 %v20
  %1536 = vmatprep.subr.mxu0 0.0
  %1537 = vmatpush1.msra.mxu0 %v21
  %1538 = vmatprep.subr.mxu0 0.0
  %1539 = vmatpush1.msra.mxu0 %v22
  %1540 = vmatprep.subr.mxu0 0.0
  %1541 = vmatpush1.msra.mxu0 %v23
  %1542 = vmatprep.subr.mxu0 0.0
  %1543 = vmatpush1.msra.mxu0 %v24
  %1544 = vmatprep.subr.mxu0 0.0
  %1545 = vmatpush1.msra.mxu0 %v25
  %1546 = vmatprep.subr.mxu0 0.0
  %1547 = vmatpush1.msra.mxu0 %v26
  %1548 = vmatprep.subr.mxu0 0.0
  %1549 = vmatpush1.msra.mxu0 %v27
  %1550 = vmatprep.subr.mxu0 0.0
  %1551 = vmatpush1.msra.mxu0 %v28
  %1552 = vmatprep.subr.mxu0 0.0
  %1553 = vmatpush1.msra.mxu0 %v29
  %1554 = vmatprep.subr.mxu0 0.0
  %1555 = vmatpush1.msra.mxu0 %v30
  %1556 = vmatprep.subr.mxu0 0.0
  %1557 = vmatpush1.msra.mxu0 %v31
  %1558 = vmatprep.subr.mxu0 0.0
  %1559 = vmatpush1.msra.mxu0 %v32
  %1560 = vmatprep.subr.mxu0 0.0
  %1561 = vmatpush1.msra.mxu0 %v33
  %1562 = vmatprep.subr.mxu0 0.0
  %1563 = vmatpush1.msra.mxu0 %v34
  %1564 = vmatprep.subr.mxu0 0.0
  %1565 = vmatpush1.msra.mxu0 %v35
  %1566 = vmatprep.subr.mxu0 0.0
  %1567 = vmatpush1.msra.mxu0 0.0
  %1568 = vmatprep.subr.mxu0 0.0
  %1569 = vmatpush1.msra.mxu0 0.0
  %1570 = vmatprep.subr.mxu0 0.0
  %1571 = vmatpush1.msra.mxu0 0.0
  %1572 = vmatprep.subr.mxu0 0.0
  %1573 = vmatpush1.msra.mxu0 0.0
  %1574 = vmatprep.subr.mxu0 0.0
  %1575 = vmatpush1.msra.mxu0 0.0
  %1576 = vmatprep.subr.mxu0 0.0
  %1577 = vmatpush1.msra.mxu0 0.0
  %1578 = vmatprep.subr.mxu0 0.0
  %1579 = vmatpush1.msra.mxu0 0.0
  %1580 = vmatprep.subr.mxu0 0.0
  %1581 = vmatpush1.msra.mxu0 0.0
  %1582 = vmatprep.subr.mxu0 0.0
  %1583 = vmatpush1.msra.mxu0 0.0
  %1584 = vmatprep.subr.mxu0 0.0
  %1585 = vmatpush1.msra.mxu0 0.0
  %1586 = vmatprep.subr.mxu0 0.0
  %1587 = vmatpush1.msra.mxu0 0.0
  %1588 = vmatprep.subr.mxu0 0.0
  %1589 = vmatpush1.msra.mxu0 0.0
  %1590 = vmatprep.subr.mxu0 0.0
  %1591 = vmatpush1.msra.mxu0 0.0
  %1592 = vmatprep.subr.mxu0 0.0
  %1593 = vmatpush1.msra.mxu0 0.0
  %1594 = vmatprep.subr.mxu0 0.0
  %1595 = vmatpush1.msra.mxu0 0.0
  %1596 = vmatprep.subr.mxu0 0.0
  %1597 = vmatpush1.msra.mxu0 0.0
  %1598 = vmatprep.mubr.f32.mxu0 0.0
  %1599 = vmatmul.mubr.f32.gmra.mrb[0].mxu0 %v1425
  %v1600 = vpop.f32.mrb[0].mxu0
  %v1601 = vadd.f32 0.0, %v1600
  %v1602 = vpop.f32.mrb[0].mxu0
  %1603 = vdwg.mxu0
  %v1604 = vadd.f32 %v222, %v1601
  %v1605 = vxor.u32 %v1604, 2147483648
  %v1606 = vmul.f32 %v1605, 1.442695
  %v1607 = vpow.pop %v1606
  %v1608 = vadd.f32 %v1607, 1.0
  %v1609 = vrcp.pop %v1608
  %v1610 = vmul.f32 1.0, %v1609
  %v1611 = vtanh.pop %v1604
  %v1612 = vmul.f32 %v1610, %v1405
  %1614 = vrot.lane.b32.xlu0 %v1611, 64
  %v1615 = vpop.permute.xlu0 %1614
  %v1617 = vmul.f32 %v1610, %v1615
  %1619 = vrot.lane.b32.xlu0 %v1617, 32
  %v1620 = vpop.permute.xlu0 %1619
  %v1622 = vadd.f32 %v1612, %v1620
  %v1623 = vtanh.pop %v1622
  %1625 = vrot.lane.b32.xlu0 %v1623, 64
  %v1626 = vpop.permute.xlu0 %1625
  %v1628 = vmul.f32 %v1610, %v1626
  %1630 = vrot.lane.b32.xlu0 %v1628, 32
  %v1631 = vpop.permute.xlu0 %1630
  %1633 = vrot.lane.b32.xlu0 %v1628, 64
  %v1634 = vpop.permute.xlu0 %1633
  %1636 = vrot.lane.b32.xlu0 %v1628, 96
  %v1637 = vpop.permute.xlu0 %1636
  %v1639 = vsel %vm100, %v1631, %v1634
  %v1640 = vsel %vm336, %v1639, %v1637
  %v1641 = vsel %vm338, %v1640, %v1628
  %v1642 = vmul.f32 %v1641, %v73
  %1643 = vmatprep.subr.mxu0 0.0
  %1644 = vmatpush1.msra.mxu0 %v36
  %1645 = vmatprep.subr.mxu0 0.0
  %1646 = vmatpush1.msra.mxu0 %v37
  %1647 = vmatprep.subr.mxu0 0.0
  %1648 = vmatpush1.msra.mxu0 %v38
  %1649 = vmatprep.subr.mxu0 0.0
  %1650 = vmatpush1.msra.mxu0 %v39
  %1651 = vmatprep.subr.mxu0 0.0
  %1652 = vmatpush1.msra.mxu0 %v40
  %1653 = vmatprep.subr.mxu0 0.0
  %1654 = vmatpush1.msra.mxu0 %v41
  %1655 = vmatprep.subr.mxu0 0.0
  %1656 = vmatpush1.msra.mxu0 %v42
  %1657 = vmatprep.subr.mxu0 0.0
  %1658 = vmatpush1.msra.mxu0 %v43
  %1659 = vmatprep.subr.mxu0 0.0
  %1660 = vmatpush1.msra.mxu0 %v44
  %1661 = vmatprep.subr.mxu0 0.0
  %1662 = vmatpush1.msra.mxu0 %v45
  %1663 = vmatprep.subr.mxu0 0.0
  %1664 = vmatpush1.msra.mxu0 %v46
  %1665 = vmatprep.subr.mxu0 0.0
  %1666 = vmatpush1.msra.mxu0 %v47
  %1667 = vmatprep.subr.mxu0 0.0
  %1668 = vmatpush1.msra.mxu0 %v48
  %1669 = vmatprep.subr.mxu0 0.0
  %1670 = vmatpush1.msra.mxu0 %v49
  %1671 = vmatprep.subr.mxu0 0.0
  %1672 = vmatpush1.msra.mxu0 %v50
  %1673 = vmatprep.subr.mxu0 0.0
  %1674 = vmatpush1.msra.mxu0 %v51
  %1675 = vmatprep.subr.mxu0 0.0
  %1676 = vmatpush1.msra.mxu0 %v52
  %1677 = vmatprep.subr.mxu0 0.0
  %1678 = vmatpush1.msra.mxu0 %v53
  %1679 = vmatprep.subr.mxu0 0.0
  %1680 = vmatpush1.msra.mxu0 %v54
  %1681 = vmatprep.subr.mxu0 0.0
  %1682 = vmatpush1.msra.mxu0 %v55
  %1683 = vmatprep.subr.mxu0 0.0
  %1684 = vmatpush1.msra.mxu0 %v56
  %1685 = vmatprep.subr.mxu0 0.0
  %1686 = vmatpush1.msra.mxu0 %v57
  %1687 = vmatprep.subr.mxu0 0.0
  %1688 = vmatpush1.msra.mxu0 %v58
  %1689 = vmatprep.subr.mxu0 0.0
  %1690 = vmatpush1.msra.mxu0 %v59
  %1691 = vmatprep.subr.mxu0 0.0
  %1692 = vmatpush1.msra.mxu0 %v60
  %1693 = vmatprep.subr.mxu0 0.0
  %1694 = vmatpush1.msra.mxu0 %v61
  %1695 = vmatprep.subr.mxu0 0.0
  %1696 = vmatpush1.msra.mxu0 %v62
  %1697 = vmatprep.subr.mxu0 0.0
  %1698 = vmatpush1.msra.mxu0 %v63
  %1699 = vmatprep.subr.mxu0 0.0
  %1700 = vmatpush1.msra.mxu0 %v64
  %1701 = vmatprep.subr.mxu0 0.0
  %1702 = vmatpush1.msra.mxu0 %v65
  %1703 = vmatprep.subr.mxu0 0.0
  %1704 = vmatpush1.msra.mxu0 %v66
  %1705 = vmatprep.subr.mxu0 0.0
  %1706 = vmatpush1.msra.mxu0 %v67
  %1707 = vmatprep.mubr.f32.mxu0 %v1533
  %1708 = vmatmul.mubr.f32.gmra.mrb[0].mxu0 %v1642
  %v1709 = vpop.f32.mrb[0].mxu0
  %v1710 = vadd.f32 %v72, %v1709
  %v1711 = vpop.f32.mrb[0].mxu0
  %1712 = vdwg.mxu0
  %v1713 = vxor.u32 %v1710, 2147483648
  %v1714 = vmul.f32 %v1713, 1.442695
  %v1715 = vpow.pop %v1714
  %v1716 = vadd.f32 %v1715, 1.0
  %v1717 = vrcp.pop %v1716
  %v1718 = vmul.f32 1.0, %v1717
  %v1719 = vtanh.pop %v1710
  %v1720 = vmul.f32 %v1718, %v1513
  %1722 = vrot.lane.b32.xlu0 %v1719, 64
  %v1723 = vpop.permute.xlu0 %1722
  %v1725 = vmul.f32 %v1718, %v1723
  %1727 = vrot.lane.b32.xlu0 %v1725, 32
  %v1728 = vpop.permute.xlu0 %1727
  %v1730 = vadd.f32 %v1720, %v1728
  %v1731 = vtanh.pop %v1730
  %1733 = vrot.lane.b32.xlu0 %v1731, 64
  %v1734 = vpop.permute.xlu0 %1733
  %v1736 = vmul.f32 %v1718, %v1734
  %1738 = vrot.lane.b32.xlu0 %v1736, 32
  %v1739 = vpop.permute.xlu0 %1738
  %1741 = vrot.lane.b32.xlu0 %v1736, 64
  %v1742 = vpop.permute.xlu0 %1741
  %1744 = vrot.lane.b32.xlu0 %v1736, 96
  %v1745 = vpop.permute.xlu0 %1744
  %v1747 = vsel %vm100, %v1739, %v1742
  %v1748 = vsel %vm336, %v1747, %v1745
  %v1749 = vsel %vm338, %v1748, %v1736
  %v1750 = vmul.f32 %v1749, %v73
  %1751 = vmatprep.subr.mxu0 0.0
  %1752 = vmatpush1.msra.mxu0 %v20
  %1753 = vmatprep.subr.mxu0 0.0
  %1754 = vmatpush1.msra.mxu0 %v21
  %1755 = vmatprep.subr.mxu0 0.0
  %1756 = vmatpush1.msra.mxu0 %v22
  %1757 = vmatprep.subr.mxu0 0.0
  %1758 = vmatpush1.msra.mxu0 %v23
  %1759 = vmatprep.subr.mxu0 0.0
  %1760 = vmatpush1.msra.mxu0 %v24
  %1761 = vmatprep.subr.mxu0 0.0
  %1762 = vmatpush1.msra.mxu0 %v25
  %1763 = vmatprep.subr.mxu0 0.0
  %1764 = vmatpush1.msra.mxu0 %v26
  %1765 = vmatprep.subr.mxu0 0.0
  %1766 = vmatpush1.msra.mxu0 %v27
  %1767 = vmatprep.subr.mxu0 0.0
  %1768 = vmatpush1.msra.mxu0 %v28
  %1769 = vmatprep.subr.mxu0 0.0
  %1770 = vmatpush1.msra.mxu0 %v29
  %1771 = vmatprep.subr.mxu0 0.0
  %1772 = vmatpush1.msra.mxu0 %v30
  %1773 = vmatprep.subr.mxu0 0.0
  %1774 = vmatpush1.msra.mxu0 %v31
  %1775 = vmatprep.subr.mxu0 0.0
  %1776 = vmatpush1.msra.mxu0 %v32
  %1777 = vmatprep.subr.mxu0 0.0
  %1778 = vmatpush1.msra.mxu0 %v33
  %1779 = vmatprep.subr.mxu0 0.0
  %1780 = vmatpush1.msra.mxu0 %v34
  %1781 = vmatprep.subr.mxu0 0.0
  %1782 = vmatpush1.msra.mxu0 %v35
  %1783 = vmatprep.subr.mxu0 0.0
  %1784 = vmatpush1.msra.mxu0 0.0
  %1785 = vmatprep.subr.mxu0 0.0
  %1786 = vmatpush1.msra.mxu0 0.0
  %1787 = vmatprep.subr.mxu0 0.0
  %1788 = vmatpush1.msra.mxu0 0.0
  %1789 = vmatprep.subr.mxu0 0.0
  %1790 = vmatpush1.msra.mxu0 0.0
  %1791 = vmatprep.subr.mxu0 0.0
  %1792 = vmatpush1.msra.mxu0 0.0
  %1793 = vmatprep.subr.mxu0 0.0
  %1794 = vmatpush1.msra.mxu0 0.0
  %1795 = vmatprep.subr.mxu0 0.0
  %1796 = vmatpush1.msra.mxu0 0.0
  %1797 = vmatprep.subr.mxu0 0.0
  %1798 = vmatpush1.msra.mxu0 0.0
  %1799 = vmatprep.subr.mxu0 0.0
  %1800 = vmatpush1.msra.mxu0 0.0
  %1801 = vmatprep.subr.mxu0 0.0
  %1802 = vmatpush1.msra.mxu0 0.0
  %1803 = vmatprep.subr.mxu0 0.0
  %1804 = vmatpush1.msra.mxu0 0.0
  %1805 = vmatprep.subr.mxu0 0.0
  %1806 = vmatpush1.msra.mxu0 0.0
  %1807 = vmatprep.subr.mxu0 0.0
  %1808 = vmatpush1.msra.mxu0 0.0
  %1809 = vmatprep.subr.mxu0 0.0
  %1810 = vmatpush1.msra.mxu0 0.0
  %1811 = vmatprep.subr.mxu0 0.0
  %1812 = vmatpush1.msra.mxu0 0.0
  %1813 = vmatprep.subr.mxu0 0.0
  %1814 = vmatpush1.msra.mxu0 0.0
  %1815 = vmatprep.mubr.f32.mxu0 0.0
  %1816 = vmatmul.mubr.f32.gmra.mrb[0].mxu0 %v1642
  %v1817 = vpop.f32.mrb[0].mxu0
  %v1818 = vadd.f32 0.0, %v1817
  %v1819 = vpop.f32.mrb[0].mxu0
  %1820 = vdwg.mxu0
  %v1821 = vadd.f32 %v227, %v1818
  %v1822 = vxor.u32 %v1821, 2147483648
  %v1823 = vmul.f32 %v1822, 1.442695
  %v1824 = vpow.pop %v1823
  %v1825 = vadd.f32 %v1824, 1.0
  %v1826 = vrcp.pop %v1825
  %v1827 = vmul.f32 1.0, %v1826
  %v1828 = vtanh.pop %v1821
  %v1829 = vmul.f32 %v1827, %v1622
  %1831 = vrot.lane.b32.xlu0 %v1828, 64
  %v1832 = vpop.permute.xlu0 %1831
  %v1834 = vmul.f32 %v1827, %v1832
  %1836 = vrot.lane.b32.xlu0 %v1834, 32
  %v1837 = vpop.permute.xlu0 %1836
  %v1839 = vadd.f32 %v1829, %v1837
  %v1840 = vtanh.pop %v1839
  %1842 = vrot.lane.b32.xlu0 %v1840, 64
  %v1843 = vpop.permute.xlu0 %1842
  %v1845 = vmul.f32 %v1827, %v1843
  %1847 = vrot.lane.b32.xlu0 %v1845, 32
  %v1848 = vpop.permute.xlu0 %1847
  %1850 = vrot.lane.b32.xlu0 %v1845, 64
  %v1851 = vpop.permute.xlu0 %1850
  %1853 = vrot.lane.b32.xlu0 %v1845, 96
  %v1854 = vpop.permute.xlu0 %1853
  %v1856 = vsel %vm100, %v1848, %v1851
  %v1857 = vsel %vm336, %v1856, %v1854
  %v1858 = vsel %vm338, %v1857, %v1845
  %v1859 = vmul.f32 %v1858, %v73
  %1860 = vmatprep.subr.mxu0 0.0
  %1861 = vmatpush1.msra.mxu0 %v36
  %1862 = vmatprep.subr.mxu0 0.0
  %1863 = vmatpush1.msra.mxu0 %v37
  %1864 = vmatprep.subr.mxu0 0.0
  %1865 = vmatpush1.msra.mxu0 %v38
  %1866 = vmatprep.subr.mxu0 0.0
  %1867 = vmatpush1.msra.mxu0 %v39
  %1868 = vmatprep.subr.mxu0 0.0
  %1869 = vmatpush1.msra.mxu0 %v40
  %1870 = vmatprep.subr.mxu0 0.0
  %1871 = vmatpush1.msra.mxu0 %v41
  %1872 = vmatprep.subr.mxu0 0.0
  %1873 = vmatpush1.msra.mxu0 %v42
  %1874 = vmatprep.subr.mxu0 0.0
  %1875 = vmatpush1.msra.mxu0 %v43
  %1876 = vmatprep.subr.mxu0 0.0
  %1877 = vmatpush1.msra.mxu0 %v44
  %1878 = vmatprep.subr.mxu0 0.0
  %1879 = vmatpush1.msra.mxu0 %v45
  %1880 = vmatprep.subr.mxu0 0.0
  %1881 = vmatpush1.msra.mxu0 %v46
  %1882 = vmatprep.subr.mxu0 0.0
  %1883 = vmatpush1.msra.mxu0 %v47
  %1884 = vmatprep.subr.mxu0 0.0
  %1885 = vmatpush1.msra.mxu0 %v48
  %1886 = vmatprep.subr.mxu0 0.0
  %1887 = vmatpush1.msra.mxu0 %v49
  %1888 = vmatprep.subr.mxu0 0.0
  %1889 = vmatpush1.msra.mxu0 %v50
  %1890 = vmatprep.subr.mxu0 0.0
  %1891 = vmatpush1.msra.mxu0 %v51
  %1892 = vmatprep.subr.mxu0 0.0
  %1893 = vmatpush1.msra.mxu0 %v52
  %1894 = vmatprep.subr.mxu0 0.0
  %1895 = vmatpush1.msra.mxu0 %v53
  %1896 = vmatprep.subr.mxu0 0.0
  %1897 = vmatpush1.msra.mxu0 %v54
  %1898 = vmatprep.subr.mxu0 0.0
  %1899 = vmatpush1.msra.mxu0 %v55
  %1900 = vmatprep.subr.mxu0 0.0
  %1901 = vmatpush1.msra.mxu0 %v56
  %1902 = vmatprep.subr.mxu0 0.0
  %1903 = vmatpush1.msra.mxu0 %v57
  %1904 = vmatprep.subr.mxu0 0.0
  %1905 = vmatpush1.msra.mxu0 %v58
  %1906 = vmatprep.subr.mxu0 0.0
  %1907 = vmatpush1.msra.mxu0 %v59
  %1908 = vmatprep.subr.mxu0 0.0
  %1909 = vmatpush1.msra.mxu0 %v60
  %1910 = vmatprep.subr.mxu0 0.0
  %1911 = vmatpush1.msra.mxu0 %v61
  %1912 = vmatprep.subr.mxu0 0.0
  %1913 = vmatpush1.msra.mxu0 %v62
  %1914 = vmatprep.subr.mxu0 0.0
  %1915 = vmatpush1.msra.mxu0 %v63
  %1916 = vmatprep.subr.mxu0 0.0
  %1917 = vmatpush1.msra.mxu0 %v64
  %1918 = vmatprep.subr.mxu0 0.0
  %1919 = vmatpush1.msra.mxu0 %v65
  %1920 = vmatprep.subr.mxu0 0.0
  %1921 = vmatpush1.msra.mxu0 %v66
  %1922 = vmatprep.subr.mxu0 0.0
  %1923 = vmatpush1.msra.mxu0 %v67
  %1924 = vmatprep.mubr.f32.mxu0 %v1750
  %1925 = vmatmul.mubr.f32.gmra.mrb[0].mxu0 %v1859
  %v1926 = vpop.f32.mrb[0].mxu0
  %v1927 = vadd.f32 %v72, %v1926
  %v1928 = vpop.f32.mrb[0].mxu0
  %1929 = vdwg.mxu0
  %v1930 = vxor.u32 %v1927, 2147483648
  %v1931 = vmul.f32 %v1930, 1.442695
  %v1932 = vpow.pop %v1931
  %v1933 = vadd.f32 %v1932, 1.0
  %v1934 = vrcp.pop %v1933
  %v1935 = vmul.f32 1.0, %v1934
  %v1936 = vtanh.pop %v1927
  %v1937 = vmul.f32 %v1935, %v1730
  %1939 = vrot.lane.b32.xlu0 %v1936, 64
  %v1940 = vpop.permute.xlu0 %1939
  %v1942 = vmul.f32 %v1935, %v1940
  %1944 = vrot.lane.b32.xlu0 %v1942, 32
  %v1945 = vpop.permute.xlu0 %1944
  %v1947 = vadd.f32 %v1937, %v1945
  %v1948 = vtanh.pop %v1947
  %1950 = vrot.lane.b32.xlu0 %v1948, 64
  %v1951 = vpop.permute.xlu0 %1950
  %v1953 = vmul.f32 %v1935, %v1951
  %1955 = vrot.lane.b32.xlu0 %v1953, 32
  %v1956 = vpop.permute.xlu0 %1955
  %1958 = vrot.lane.b32.xlu0 %v1953, 64
  %v1959 = vpop.permute.xlu0 %1958
  %1961 = vrot.lane.b32.xlu0 %v1953, 96
  %v1962 = vpop.permute.xlu0 %1961
  %v1964 = vsel %vm100, %v1956, %v1959
  %v1965 = vsel %vm336, %v1964, %v1962
  %v1966 = vsel %vm338, %v1965, %v1953
  %v1967 = vmul.f32 %v1966, %v73
  %v1969 = vcombine.high %v1967, %v1967
  %v1971 = vunpack.c.l.s4 1983009808
  %v1972 = vunpack.c.0.s8 %v1971
  %v1973 = vlaneseq
  %v1974 = vshrl.u32 %v1973, 7
  %v1975 = vsub.s32 %v1972, %v1974
  %v1976 = vrot.slane %v1967, %v1975
  %v1978 = vunpack.c.l.s4 1983009808
  %v1979 = vunpack.c.0.s8 %v1978
  %v1980 = vlaneseq
  %v1981 = vshrl.u32 %v1980, 7
  %v1982 = vsub.s32 %v1979, %v1981
  %v1983 = vrot.slane %v1969, %v1982
  %v1984 = vcombine.high %v1976, %v1976
  %v1985 = vcombine.high %v1983, %v1983
  %vm1990 = vcmask 1041408
  %v1991 = vsel %vm1990, %v1976, 0.0
  %v1992 = vsel %vm1990, %v1984, 0.0
  %v1993 = vadd.f32 %v1991, %v1992
  %v1994 = vsel %vm1990, %v1983, 0.0
  %v1995 = vadd.f32 %v1993, %v1994
  %v1996 = vsel %vm1990, %v1985, 0.0
  %v1997 = vadd.f32 %v1995, %v1996
  %v1999 = vlaneseq
  %v2000 = vshrl.u32 %v1999, 7
  %v2001 = vsub.s32 0, %v2000
  %v2002 = vrot.slane %v91, %v2001
  %2004 = vmatprep.subr.mxu0 0.0
  %2005 = vmatpush1.msra.mxu0 %v75
  %2006 = vmatprep.subr.mxu0 0.0
  %2007 = vmatpush1.msra.mxu0 %v76
  %2008 = vmatprep.subr.mxu0 0.0
  %2009 = vmatpush1.msra.mxu0 %v77
  %2010 = vmatprep.subr.mxu0 0.0
  %2011 = vmatpush1.msra.mxu0 %v78
  %2012 = vmatprep.subr.mxu0 0.0
  %2013 = vmatpush1.msra.mxu0 %v79
  %2014 = vmatprep.subr.mxu0 0.0
  %2015 = vmatpush1.msra.mxu0 %v80
  %2016 = vmatprep.subr.mxu0 0.0
  %2017 = vmatpush1.msra.mxu0 %v81
  %2018 = vmatprep.subr.mxu0 0.0
  %2019 = vmatpush1.msra.mxu0 %v82
  %2020 = vmatprep.subr.mxu0 0.0
  %2021 = vmatpush1.msra.mxu0 %v83
  %2022 = vmatprep.subr.mxu0 0.0
  %2023 = vmatpush1.msra.mxu0 %v84
  %2024 = vmatprep.subr.mxu0 0.0
  %2025 = vmatpush1.msra.mxu0 %v85
  %2026 = vmatprep.subr.mxu0 0.0
  %2027 = vmatpush1.msra.mxu0 %v86
  %2028 = vmatprep.subr.mxu0 0.0
  %2029 = vmatpush1.msra.mxu0 %v87
  %2030 = vmatprep.subr.mxu0 0.0
  %2031 = vmatpush1.msra.mxu0 %v88
  %2032 = vmatprep.subr.mxu0 0.0
  %2033 = vmatpush1.msra.mxu0 %v89
  %2034 = vmatprep.subr.mxu0 0.0
  %2035 = vmatpush1.msra.mxu0 %v90
  %2036 = vmatprep.subr.mxu0 0.0
  %2037 = vmatpush1.msra.mxu0 0.0
  %2038 = vmatprep.subr.mxu0 0.0
  %2039 = vmatpush1.msra.mxu0 0.0
  %2040 = vmatprep.subr.mxu0 0.0
  %2041 = vmatpush1.msra.mxu0 0.0
  %2042 = vmatprep.subr.mxu0 0.0
  %2043 = vmatpush1.msra.mxu0 0.0
  %2044 = vmatprep.subr.mxu0 0.0
  %2045 = vmatpush1.msra.mxu0 0.0
  %2046 = vmatprep.subr.mxu0 0.0
  %2047 = vmatpush1.msra.mxu0 0.0
  %2048 = vmatprep.subr.mxu0 0.0
  %2049 = vmatpush1.msra.mxu0 0.0
  %2050 = vmatprep.subr.mxu0 0.0
  %2051 = vmatpush1.msra.mxu0 0.0
  %2052 = vmatprep.subr.mxu0 0.0
  %2053 = vmatpush1.msra.mxu0 0.0
  %2054 = vmatprep.subr.mxu0 0.0
  %2055 = vmatpush1.msra.mxu0 0.0
  %2056 = vmatprep.subr.mxu0 0.0
  %2057 = vmatpush1.msra.mxu0 0.0
  %2058 = vmatprep.subr.mxu0 0.0
  %2059 = vmatpush1.msra.mxu0 0.0
  %2060 = vmatprep.subr.mxu0 0.0
  %2061 = vmatpush1.msra.mxu0 0.0
  %2062 = vmatprep.subr.mxu0 0.0
  %2063 = vmatpush1.msra.mxu0 0.0
  %2064 = vmatprep.subr.mxu0 0.0
  %2065 = vmatpush1.msra.mxu0 0.0
  %2066 = vmatprep.subr.mxu0 0.0
  %2067 = vmatpush1.msra.mxu0 0.0
  %2068 = vmatprep.mubr.f32.mxu0 0.0
  %2069 = vmatmul.mubr.f32.gmra.mrb[0].mxu0 %v1997
  %v2070 = vpop.f32.mrb[0].mxu0
  %v2071 = vadd.f32 %v2002, %v2070
  %v2072 = vpop.f32.mrb[0].mxu0
  %2073 = vdwg.mxu0
  %vm2074 = vcmask 25600
  %v2075 = vsel %vm2074, %v2071, -inf
  %2076 = vmax.xlane.f32.xlu0 %v2075
  %v2077 = vpop.xlane.xlu0 %2076
  %v2078 = vsub.f32 %v2071, %v2077
  %v2079 = vmul.f32 %v2078, 1.442695
  %v2080 = vpow.pop %v2079
  %v2081 = vsel %vm2074, %v2080, 0.0
  %2082 = vadd.xlane.f32.xlu0 %v2081
  %v2083 = vpop.xlane.xlu0 %2082
  %v2084 = vrcp.pop %v2083
  %v2085 = vmul.f32 %v2080, %v2084
  %vm2086 = vcmask 31744
  %v2088 = vsel %vm2086, %v2085, 0
  %vm2090 = vcmask 1043456
  %v2092 = vsel %vm2090, %v74, 0
  %2094 = vmatprep.subr.mxu0 0.0
  %2095 = vmatpush1.msra.mxu0 %v2092
  %2096 = vmatprep.subr.mxu0 0.0
  %2097 = vmatpush1.msra.mxu0 0.0
  %2098 = vmatprep.subr.mxu0 0.0
  %2099 = vmatpush1.msra.mxu0 0.0
  %2100 = vmatprep.subr.mxu0 0.0
  %2101 = vmatpush1.msra.mxu0 0.0
  %2102 = vmatprep.subr.mxu0 0.0
  %2103 = vmatpush1.msra.mxu0 0.0
  %2104 = vmatprep.subr.mxu0 0.0
  %2105 = vmatpush1.msra.mxu0 0.0
  %2106 = vmatprep.subr.mxu0 0.0
  %2107 = vmatpush1.msra.mxu0 0.0
  %2108 = vmatprep.subr.mxu0 0.0
  %2109 = vmatpush1.msra.mxu0 0.0
  %2110 = vmatprep.subr.mxu0 0.0
  %2111 = vmatpush1.msra.mxu0 0.0
  %2112 = vmatprep.subr.mxu0 0.0
  %2113 = vmatpush1.msra.mxu0 0.0
  %2114 = vmatprep.subr.mxu0 0.0
  %2115 = vmatpush1.msra.mxu0 0.0
  %2116 = vmatprep.subr.mxu0 0.0
  %2117 = vmatpush1.msra.mxu0 0.0
  %2118 = vmatprep.subr.mxu0 0.0
  %2119 = vmatpush1.msra.mxu0 0.0
  %2120 = vmatprep.subr.mxu0 0.0
  %2121 = vmatpush1.msra.mxu0 0.0
  %2122 = vmatprep.subr.mxu0 0.0
  %2123 = vmatpush1.msra.mxu0 0.0
  %2124 = vmatprep.subr.mxu0 0.0
  %2125 = vmatpush1.msra.mxu0 0.0
  %2126 = vmatprep.subr.mxu0 0.0
  %2127 = vmatpush1.msra.mxu0 0.0
  %2128 = vmatprep.subr.mxu0 0.0
  %2129 = vmatpush1.msra.mxu0 0.0
  %2130 = vmatprep.subr.mxu0 0.0
  %2131 = vmatpush1.msra.mxu0 0.0
  %2132 = vmatprep.subr.mxu0 0.0
  %2133 = vmatpush1.msra.mxu0 0.0
  %2134 = vmatprep.subr.mxu0 0.0
  %2135 = vmatpush1.msra.mxu0 0.0
  %2136 = vmatprep.subr.mxu0 0.0
  %2137 = vmatpush1.msra.mxu0 0.0
  %2138 = vmatprep.subr.mxu0 0.0
  %2139 = vmatpush1.msra.mxu0 0.0
  %2140 = vmatprep.subr.mxu0 0.0
  %2141 = vmatpush1.msra.mxu0 0.0
  %2142 = vmatprep.subr.mxu0 0.0
  %2143 = vmatpush1.msra.mxu0 0.0
  %2144 = vmatprep.subr.mxu0 0.0
  %2145 = vmatpush1.msra.mxu0 0.0
  %2146 = vmatprep.subr.mxu0 0.0
  %2147 = vmatpush1.msra.mxu0 0.0
  %2148 = vmatprep.subr.mxu0 0.0
  %2149 = vmatpush1.msra.mxu0 0.0
  %2150 = vmatprep.subr.mxu0 0.0
  %2151 = vmatpush1.msra.mxu0 0.0
  %2152 = vmatprep.subr.mxu0 0.0
  %2153 = vmatpush1.msra.mxu0 0.0
  %2154 = vmatprep.subr.mxu0 0.0
  %2155 = vmatpush1.msra.mxu0 0.0
  %2156 = vmatprep.subr.mxu0 0.0
  %2157 = vmatpush1.msra.mxu0 0.0
  %2158 = vmatprep.mubr.f32.mxu0 0.0
  %2159 = vmatmul.mubr.f32.gmra.mrb[0].mxu0 %v2088
  %v2160 = vpop.f32.mrb[0].mxu0
  %v2161 = vadd.f32 0.0, %v2160
  %v2162 = vpop.f32.mrb[0].mxu0
  %2163 = vdwg.mxu0
  %v2164 = vmul.f32 %v1997, %v2161
  %2166 = vrot.lane.b32.xlu0 %v2164, 96
  %v2167 = vpop.permute.xlu0 %2166
  %v2169 = vadd.f32 %v2164, %v2167
  %2170 = vrot.lane.b32.xlu0 %v2164, 64
  %v2171 = vpop.permute.xlu0 %2170
  %v2173 = vadd.f32 %v2169, %v2171
  %2174 = vrot.lane.b32.xlu0 %v2164, 32
  %v2175 = vpop.permute.xlu0 %2174
  %v2177 = vadd.f32 %v2173, %v2175
  %vm2178 = vcmask 254976
  %v2179 = vsel %vm2178, %v2177, 0.0
  %2180 = vadd.xlane.f32.xlu0 %v2179
  %v2181 = vpop.xlane.xlu0 %2180
  %v2182 = vrcp.pop 32.0
  %v2183 = vmul.f32 %v2181, %v2182
  %v2184 = vsub.f32 %v2177, %v2183
  %v2185 = vmul.f32 %v2184, %v2184
  %v2186 = vsel %vm2178, %v2185, 0.0
  %2187 = vadd.xlane.f32.xlu0 %v2186
  %v2188 = vpop.xlane.xlu0 %2187
  %v2189 = vmul.f32 %v2188, %v2182
  %v2190 = vadd.f32 %v2189, 1e-05
  %v2191 = vrsqrt.pop %v2190
  %v2192 = vmul.f32 %v2184, %v2191
  %2193 = vrot.lane.b32.xlu0 %v2002, 124
  %v2194 = vpop.permute.xlu0 %2193
  %v2196 = vmul.f32 %v2192, %v2194
  %2197 = vrot.lane.b32.xlu0 %v2002, 92
  %v2198 = vpop.permute.xlu0 %2197
  %v2200 = vadd.f32 %v2196, %v2198
  %2205 = vrot.lane.b32.xlu0 %v75, 124
  %v2206 = vpop.permute.xlu0 %2205
  %2207 = vrot.lane.b32.xlu0 %v76, 124
  %v2208 = vpop.permute.xlu0 %2207
  %2209 = vrot.lane.b32.xlu0 %v77, 124
  %v2210 = vpop.permute.xlu0 %2209
  %2211 = vrot.lane.b32.xlu0 %v78, 124
  %v2212 = vpop.permute.xlu0 %2211
  %2217 = vrot.lane.b32.xlu0 %v2002, 60
  %v2218 = vpop.permute.xlu0 %2217
  %v2221 = vsel %vm100, %v2200, 0
  %2223 = vmatprep.subr.mxu0 0.0
  %2224 = vmatpush1.msra.mxu0 %v2206
  %2225 = vmatprep.subr.mxu0 0.0
  %2226 = vmatpush1.msra.mxu0 %v2208
  %2227 = vmatprep.subr.mxu0 0.0
  %2228 = vmatpush1.msra.mxu0 %v2210
  %2229 = vmatprep.subr.mxu0 0.0
  %2230 = vmatpush1.msra.mxu0 %v2212
  %2231 = vmatprep.subr.mxu0 0.0
  %2232 = vmatpush1.msra.mxu0 0.0
  %2233 = vmatprep.subr.mxu0 0.0
  %2234 = vmatpush1.msra.mxu0 0.0
  %2235 = vmatprep.subr.mxu0 0.0
  %2236 = vmatpush1.msra.mxu0 0.0
  %2237 = vmatprep.subr.mxu0 0.0
  %2238 = vmatpush1.msra.mxu0 0.0
  %2239 = vmatprep.subr.mxu0 0.0
  %2240 = vmatpush1.msra.mxu0 0.0
  %2241 = vmatprep.subr.mxu0 0.0
  %2242 = vmatpush1.msra.mxu0 0.0
  %2243 = vmatprep.subr.mxu0 0.0
  %2244 = vmatpush1.msra.mxu0 0.0
  %2245 = vmatprep.subr.mxu0 0.0
  %2246 = vmatpush1.msra.mxu0 0.0
  %2247 = vmatprep.subr.mxu0 0.0
  %2248 = vmatpush1.msra.mxu0 0.0
  %2249 = vmatprep.subr.mxu0 0.0
  %2250 = vmatpush1.msra.mxu0 0.0
  %2251 = vmatprep.subr.mxu0 0.0
  %2252 = vmatpush1.msra.mxu0 0.0
  %2253 = vmatprep.subr.mxu0 0.0
  %2254 = vmatpush1.msra.mxu0 0.0
  %2255 = vmatprep.subr.mxu0 0.0
  %2256 = vmatpush1.msra.mxu0 0.0
  %2257 = vmatprep.subr.mxu0 0.0
  %2258 = vmatpush1.msra.mxu0 0.0
  %2259 = vmatprep.subr.mxu0 0.0
  %2260 = vmatpush1.msra.mxu0 0.0
  %2261 = vmatprep.subr.mxu0 0.0
  %2262 = vmatpush1.msra.mxu0 0.0
  %2263 = vmatprep.subr.mxu0 0.0
  %2264 = vmatpush1.msra.mxu0 0.0
  %2265 = vmatprep.subr.mxu0 0.0
  %2266 = vmatpush1.msra.mxu0 0.0
  %2267 = vmatprep.subr.mxu0 0.0
  %2268 = vmatpush1.msra.mxu0 0.0
  %2269 = vmatprep.subr.mxu0 0.0
  %2270 = vmatpush1.msra.mxu0 0.0
  %2271 = vmatprep.subr.mxu0 0.0
  %2272 = vmatpush1.msra.mxu0 0.0
  %2273 = vmatprep.subr.mxu0 0.0
  %2274 = vmatpush1.msra.mxu0 0.0
  %2275 = vmatprep.subr.mxu0 0.0
  %2276 = vmatpush1.msra.mxu0 0.0
  %2277 = vmatprep.subr.mxu0 0.0
  %2278 = vmatpush1.msra.mxu0 0.0
  %2279 = vmatprep.subr.mxu0 0.0
  %2280 = vmatpush1.msra.mxu0 0.0
  %2281 = vmatprep.subr.mxu0 0.0
  %2282 = vmatpush1.msra.mxu0 0.0
  %2283 = vmatprep.subr.mxu0 0.0
  %2284 = vmatpush1.msra.mxu0 0.0
  %2285 = vmatprep.subr.mxu0 0.0
  %2286 = vmatpush1.msra.mxu0 0.0
  %2287 = vmatprep.mubr.f32.mxu0 0.0
  %2288 = vmatmul.mubr.f32.gmra.mrb[0].mxu0 %v2221
  %v2289 = vpop.f32.mrb[0].mxu0
  %v2290 = vadd.f32 %v2218, %v2289
  %v2291 = vpop.f32.mrb[0].mxu0
  %2292 = vdwg.mxu0
  %v2293 = vmax.f32 %v2290, 0.0
  %2294 = vrot.lane.b32.xlu0 %v75, 108
  %v2295 = vpop.permute.xlu0 %2294
  %2296 = vrot.lane.b32.xlu0 %v76, 108
  %v2297 = vpop.permute.xlu0 %2296
  %2300 = vrot.lane.b32.xlu0 %v2002, 44
  %v2301 = vpop.permute.xlu0 %2300
  %vm2303 = vcmask 130048
  %v2305 = vsel %vm2303, %v2293, 0
  %2307 = vmatprep.subr.mxu0 0.0
  %2308 = vmatpush1.msra.mxu0 %v2295
  %2309 = vmatprep.subr.mxu0 0.0
  %2310 = vmatpush1.msra.mxu0 %v2297
  %2311 = vmatprep.subr.mxu0 0.0
  %2312 = vmatpush1.msra.mxu0 0.0
  %2313 = vmatprep.subr.mxu0 0.0
  %2314 = vmatpush1.msra.mxu0 0.0
  %2315 = vmatprep.subr.mxu0 0.0
  %2316 = vmatpush1.msra.mxu0 0.0
  %2317 = vmatprep.subr.mxu0 0.0
  %2318 = vmatpush1.msra.mxu0 0.0
  %2319 = vmatprep.subr.mxu0 0.0
  %2320 = vmatpush1.msra.mxu0 0.0
  %2321 = vmatprep.subr.mxu0 0.0
  %2322 = vmatpush1.msra.mxu0 0.0
  %2323 = vmatprep.subr.mxu0 0.0
  %2324 = vmatpush1.msra.mxu0 0.0
  %2325 = vmatprep.subr.mxu0 0.0
  %2326 = vmatpush1.msra.mxu0 0.0
  %2327 = vmatprep.subr.mxu0 0.0
  %2328 = vmatpush1.msra.mxu0 0.0
  %2329 = vmatprep.subr.mxu0 0.0
  %2330 = vmatpush1.msra.mxu0 0.0
  %2331 = vmatprep.subr.mxu0 0.0
  %2332 = vmatpush1.msra.mxu0 0.0
  %2333 = vmatprep.subr.mxu0 0.0
  %2334 = vmatpush1.msra.mxu0 0.0
  %2335 = vmatprep.subr.mxu0 0.0
  %2336 = vmatpush1.msra.mxu0 0.0
  %2337 = vmatprep.subr.mxu0 0.0
  %2338 = vmatpush1.msra.mxu0 0.0
  %2339 = vmatprep.subr.mxu0 0.0
  %2340 = vmatpush1.msra.mxu0 0.0
  %2341 = vmatprep.subr.mxu0 0.0
  %2342 = vmatpush1.msra.mxu0 0.0
  %2343 = vmatprep.subr.mxu0 0.0
  %2344 = vmatpush1.msra.mxu0 0.0
  %2345 = vmatprep.subr.mxu0 0.0
  %2346 = vmatpush1.msra.mxu0 0.0
  %2347 = vmatprep.subr.mxu0 0.0
  %2348 = vmatpush1.msra.mxu0 0.0
  %2349 = vmatprep.subr.mxu0 0.0
  %2350 = vmatpush1.msra.mxu0 0.0
  %2351 = vmatprep.subr.mxu0 0.0
  %2352 = vmatpush1.msra.mxu0 0.0
  %2353 = vmatprep.subr.mxu0 0.0
  %2354 = vmatpush1.msra.mxu0 0.0
  %2355 = vmatprep.subr.mxu0 0.0
  %2356 = vmatpush1.msra.mxu0 0.0
  %2357 = vmatprep.subr.mxu0 0.0
  %2358 = vmatpush1.msra.mxu0 0.0
  %2359 = vmatprep.subr.mxu0 0.0
  %2360 = vmatpush1.msra.mxu0 0.0
  %2361 = vmatprep.subr.mxu0 0.0
  %2362 = vmatpush1.msra.mxu0 0.0
  %2363 = vmatprep.subr.mxu0 0.0
  %2364 = vmatpush1.msra.mxu0 0.0
  %2365 = vmatprep.subr.mxu0 0.0
  %2366 = vmatpush1.msra.mxu0 0.0
  %2367 = vmatprep.subr.mxu0 0.0
  %2368 = vmatpush1.msra.mxu0 0.0
  %2369 = vmatprep.subr.mxu0 0.0
  %2370 = vmatpush1.msra.mxu0 0.0
  %2371 = vmatprep.mubr.f32.mxu0 0.0
  %2372 = vmatmul.mubr.f32.gmra.mrb[0].mxu0 %v2305
  %v2373 = vpop.f32.mrb[0].mxu0
  %v2374 = vadd.f32 %v2301, %v2373
  %v2375 = vpop.f32.mrb[0].mxu0
  %2376 = vdwg.mxu0
  %vm2377 = vcmask 1024
  %2378 = vst.msk [vmem:[%s5] sm:$0x3] %vm2377, %v2374
  // Predicated region
  $region22: #{mi_lstm_forward.1} parent=0 // pred_check
    _
  $region23: #{mi_lstm_forward.1} parent=0 // pred_check_branch
    %2380 = sbr.rel (0) target = $region25
  $region24: #{mi_lstm_forward.1} parent=0 // pred_region
    _
  $region25: #{mi_lstm_forward.1} parent=0 // pred_fallthru
    _
  // Predicated region
  $region26: #{mi_lstm_forward.1} parent=0 // pred_check
    _
  $region27: #{mi_lstm_forward.1} parent=0 // pred_check_branch
    %2382 = sbr.rel (0) target = $region29
  $region28: #{mi_lstm_forward.1} parent=0 // pred_region
    _
  $region29: #{mi_lstm_forward.1} parent=0 // pred_fallthru
    _

</llo_original>
